<compile_context>
chip_gen: v7x
topology: tpu7x:2x2x1
jax: 0.10.0
libtpu: 0.0.40
codegen_flags: <defaults>
</compile_context>

<pallas_src>
import functools

import jax
import jax.numpy as jnp
from jax.experimental import pallas as pl
from jax.experimental.pallas import tpu as pltpu

DIM = 128                      # embedding dim
NUM_HEADS = 8
HEAD_DIM = DIM // NUM_HEADS    # 16
SCALE = 128.0 ** -0.5          # module hard-codes head_dim = 128 for the scale


# ------------------------------ fused kernel --------------------------------

def _attention_kernel(q_ref, kv_ref, wkv_t_ref, wproj_t_ref, bproj_ref, o_ref,
                      *, num_heads, n_q, n_kv, compute_dtype):
    """One batch tile: kv-proj -> multi-head attention -> fused merge+proj."""
    rows_q, C = q_ref.shape
    H, Dh = num_heads, C // num_heads
    Bt = rows_q // n_q

    w_kv = wkv_t_ref[...]                                  # (C, 2C)  compute_dtype
    w_p = wproj_t_ref[...]                                 # (C, C)   compute_dtype
    bias = bproj_ref[...]                                  # (1, C)   f32

    # kv Linear (no bias): one big lane-dense MXU matmul over the whole batch
    # tile (M = Bt*Nkv rows).
    kv2 = jnp.dot(kv_ref[...].astype(compute_dtype), w_kv,
                  preferred_element_type=jnp.float32)      # (Bt*Nkv, 2C) f32
    kv2_c = kv2.astype(compute_dtype)
    q_c = q_ref[...].astype(compute_dtype)                 # (Bt*Nq, C)

    # Per batch element / per head attention.  Heads of q, k and v are static
    # LANE slices of lane-dense tiles (no relayout); the head merge + output
    # projection are fused into an MXU accumulation over heads.
    # TODO(synk): for long Nkv, tile the Nkv axis with an online (flash-style)
    # softmax instead of materializing the full (Bt*Nkv, 2C) kv2 (v7x VMEM is
    # 64 MiB); a batched dot_general over H is another option if H grows.
    for bi in range(Bt):
        q_b = q_c[bi * n_q:(bi + 1) * n_q, :]              # (Nq, C)
        k_b = kv2_c[bi * n_kv:(bi + 1) * n_kv, :C]         # (Nkv, C)
        v_b = kv2_c[bi * n_kv:(bi + 1) * n_kv, C:]         # (Nkv, C)

        acc = jnp.zeros((n_q, C), jnp.float32)
        for h in range(H):
            lo, hi = h * Dh, (h + 1) * Dh
            q_h, k_h, v_h = q_b[:, lo:hi], k_b[:, lo:hi], v_b[:, lo:hi]

            # Scores + softmax in f32 (numerics match torch; safe on v5e).
            s = jnp.einsum("qd,kd->qk", q_h, k_h,
                           preferred_element_type=jnp.float32) * SCALE
            s = s - jnp.max(s, axis=-1, keepdims=True)
            e = jnp.exp(s)
            p = e * pl.reciprocal(jnp.sum(e, axis=-1, keepdims=True), approx=True)

            out_h = jnp.dot(p.astype(compute_dtype), v_h,
                            preferred_element_type=jnp.float32)       # (Nq, Dh)

            # Head merge fused into the output projection: equivalent to the
            # torch transpose/reshape + proj, but done as an MXU accumulation
            # (no lane concatenation).
            acc = acc + jnp.dot(out_h.astype(compute_dtype), w_p[lo:hi, :],
                                preferred_element_type=jnp.float32)

        o_ref[bi * n_q:(bi + 1) * n_q, :] = acc + bias     # lane-dense store


# -------------------------------- wrapper ------------------------------------

def _pick_batch_tile(batch, rows_per_item, target_rows=256, min_grid_steps=2):
    """Largest divisor Bt of `batch` with Bt*rows_per_item <= target_rows,
    keeping at least `min_grid_steps` grid steps when the batch allows it
    (v7x has 2 TensorCores; on v5e/v6e a single big step would also be fine)."""
    best = 1
    for bt in range(1, batch + 1):
        if batch % bt:
            continue
        if bt > 1 and bt * rows_per_item > target_rows:
            break
        if batch // bt >= min_grid_steps or batch < min_grid_steps:
            best = bt
    return best


@functools.partial(jax.jit, static_argnames=("num_heads", "compute_dtype"))
def attention_forward(q, kv, w_kv_t, w_proj_t, b_proj, *,
                      num_heads=NUM_HEADS, compute_dtype=jnp.float32):
    """q: (B, Nq, C), kv: (B, Nkv, C).
    w_kv_t: (C, 2C) and w_proj_t: (C, C) are the PyTorch Linear weights
    pre-transposed ONCE outside the hot path; b_proj: (C,)."""
    B, Nq, C = q.shape
    _, Nkv, _ = kv.shape
    H = num_heads
    Dh = C // H

    # Module quirk: q's head split has NO permute, so head h is the h-th
    # contiguous (Nq, Dh) chunk of q[b].ravel().  Rearrange q once (tiny XLA
    # transpose) so that inside the kernel heads of q -- like k and v -- are
    # static LANE slices of a lane-dense (rows, C=128) tile.
    q_lane = q.reshape(B, H, Nq, Dh).transpose(0, 2, 1, 3).reshape(B * Nq, C)
    kv_flat = kv.reshape(B * Nkv, C)                       # free contiguous reshape

    bt = _pick_batch_tile(B, max(Nq, Nkv))
    grid = (B // bt,)

    kernel = functools.partial(_attention_kernel, num_heads=H, n_q=Nq, n_kv=Nkv,
                               compute_dtype=compute_dtype)

    out_flat = pl.pallas_call(
        kernel,
        out_shape=jax.ShapeDtypeStruct((B * Nq, C), jnp.float32),
        grid_spec=pltpu.PrefetchScalarGridSpec(
            num_scalar_prefetch=0,
            grid=grid,
            in_specs=[
                pl.BlockSpec((bt * Nq, C), lambda i: (i, 0)),     # q   (lane-dense)
                pl.BlockSpec((bt * Nkv, C), lambda i: (i, 0)),    # kv  (lane-dense)
                pl.BlockSpec((C, 2 * C), lambda i: (0, 0)),       # W_kv^T
                pl.BlockSpec((C, C), lambda i: (0, 0)),           # W_proj^T
                pl.BlockSpec((1, C), lambda i: (0, 0)),           # b_proj
            ],
            out_specs=pl.BlockSpec((bt * Nq, C), lambda i: (i, 0)),
        ),
        compiler_params=pltpu.CompilerParams(
            dimension_semantics=("parallel",)),
    )(q_lane, kv_flat,
      w_kv_t.astype(compute_dtype), w_proj_t.astype(compute_dtype),
      b_proj.reshape(1, C))
    return out_flat.reshape(B, Nq, C)


# ------------------------- pure-JAX reference (torch) ------------------------

def attention_reference(q, kv, w_kv, w_proj, b_proj, num_heads=NUM_HEADS):
    B_kv, N_kv, C_kv = kv.shape
    kvp = jnp.einsum("bnc,oc->bno", kv, w_kv)                     # Linear, no bias
    kvp = kvp.reshape(B_kv, N_kv, 2, num_heads, C_kv // num_heads)
    kvp = jnp.transpose(kvp, (2, 0, 3, 1, 4))
    k, v = kvp[0], kvp[1]
    qh = q.reshape(q.shape[0], num_heads, q.shape[1], q.shape[2] // num_heads)
    attn = jnp.einsum("bhqd,bhkd->bhqk", qh, k) * SCALE
    attn = jax.nn.softmax(attn, axis=-1)
    x = jnp.einsum("bhqk,bhkd->bhqd", attn, v)
    x = jnp.transpose(x, (0, 2, 1, 3)).reshape(qh.shape[0], qh.shape[2], -1)
    return jnp.einsum("bnc,oc->bno", x, w_proj) + b_proj


# ---------------------------------- main --------------------------------------

if __name__ == "__main__":
    key = jax.random.PRNGKey(0)
    kq, kkv, k1, k2, k3 = jax.random.split(key, 5)

    B, N_q, N_kv = 2, 8, 8
    q = jax.random.normal(kq, (B, N_q, DIM), jnp.float32)
    kv = jax.random.normal(kkv, (B, N_kv, DIM), jnp.float32)

    s = 0.02
    w_kv = s * jax.random.normal(k1, (2 * DIM, DIM), jnp.float32)   # torch (out, in)
    w_proj = s * jax.random.normal(k2, (DIM, DIM), jnp.float32)
    b_proj = s * jax.random.normal(k3, (DIM,), jnp.float32)

    # Pre-transpose weights ONCE outside the jitted hot path (a real model would
    # store them this way) -- removes per-call HBM->HBM transpose copies.
    w_kv_t = jnp.asarray(w_kv.T)       # (C, 2C)
    w_proj_t = jnp.asarray(w_proj.T)   # (C, C)

    # f32 matmul path (bit-faithful to the torch module up to approx reciprocal).
    out = attention_forward(q, kv, w_kv_t, w_proj_t, b_proj)
    out = jax.block_until_ready(out)

    assert out.shape == (B, N_q, DIM) and out.dtype == jnp.float32
    assert bool(jnp.all(jnp.isfinite(out)))

    ref = attention_reference(q, kv, w_kv, w_proj, b_proj)
    max_err = float(jnp.max(jnp.abs(out - ref)))
    assert max_err < 5e-3, f"max abs error vs reference: {max_err}"

    # Optional bf16 matmul-operand path (native MXU rate, half the weight DMA
    # bytes); softmax stays f32.  Looser tolerance.
    out_bf16 = jax.block_until_ready(
        attention_forward(q, kv, w_kv_t, w_proj_t, b_proj,
                          compute_dtype=jnp.bfloat16))
    assert bool(jnp.all(jnp.isfinite(out_bf16)))
    bf16_err = float(jnp.max(jnp.abs(out_bf16 - ref)))
    assert bf16_err < 5e-2, f"bf16 path max abs error vs reference: {bf16_err}"

    print("KERNEL_OK")
</pallas_src>

<mosaic_0001>
module attributes {stable_mosaic.version = 11 : i64} {
  func.func @_attention_kernel(%arg0: i32, %arg1: memref<8x128xf32, #tpu.memory_space<vmem>>, %arg2: memref<8x128xf32, #tpu.memory_space<vmem>>, %arg3: memref<128x256xf32, #tpu.memory_space<vmem>>, %arg4: memref<128x128xf32, #tpu.memory_space<vmem>>, %arg5: memref<1x128xf32, #tpu.memory_space<vmem>>, %arg6: memref<8x128xf32, #tpu.memory_space<vmem>>) attributes {dimension_semantics = [#tpu.dimension_semantics<parallel>], iteration_bounds = array<i64: 2>, scalar_prefetch = 0 : i64, scratch_operands = 0 : i64, tpu.core_type = #tpu.core_type<tc>, window_params = [{transform_indices = @transform_0, window_bounds = array<i64: 8, 128>}, {transform_indices = @transform_1, window_bounds = array<i64: 8, 128>}, {pipeline_mode = #tpu.pipeline_mode<synchronous>, transform_indices = @transform_2, window_bounds = array<i64: 128, 256>}, {pipeline_mode = #tpu.pipeline_mode<synchronous>, transform_indices = @transform_3, window_bounds = array<i64: 128, 128>}, {pipeline_mode = #tpu.pipeline_mode<synchronous>, transform_indices = @transform_4, window_bounds = array<i64: 1, 128>}, {transform_indices = @transform_5, window_bounds = array<i64: 8, 128>}]} {
    %c0 = arith.constant 0 : index
    %c0_0 = arith.constant 0 : index
    %0 = vector.load %arg3[%c0, %c0_0] : memref<128x256xf32, #tpu.memory_space<vmem>>, vector<128x256xf32>
    %c0_1 = arith.constant 0 : index
    %c0_2 = arith.constant 0 : index
    %1 = vector.load %arg4[%c0_1, %c0_2] : memref<128x128xf32, #tpu.memory_space<vmem>>, vector<128x128xf32>
    %c0_3 = arith.constant 0 : index
    %c0_4 = arith.constant 0 : index
    %2 = vector.load %arg5[%c0_3, %c0_4] : memref<1x128xf32, #tpu.memory_space<vmem>>, vector<1x128xf32>
    %c0_5 = arith.constant 0 : index
    %c0_6 = arith.constant 0 : index
    %3 = vector.load %arg2[%c0_5, %c0_6] : memref<8x128xf32, #tpu.memory_space<vmem>>, vector<8x128xf32>
    %cst = arith.constant dense<0.000000e+00> : vector<8x256xf32>
    %4 = tpu.matmul %3, %0, %cst {dimension_numbers = #tpu.dot_dimension_numbers<[1], [0], [0], [1], [0, 0, 1, 1], [], []>} : vector<8x128xf32>, vector<128x256xf32>, vector<8x256xf32> -> vector<8x256xf32>
    %c0_7 = arith.constant 0 : index
    %c0_8 = arith.constant 0 : index
    %5 = vector.load %arg1[%c0_7, %c0_8] : memref<8x128xf32, #tpu.memory_space<vmem>>, vector<8x128xf32>
    %6 = vector.extract_strided_slice %4 {offsets = [0, 0], sizes = [8, 128], strides = [1, 1]} : vector<8x256xf32> to vector<8x128xf32>
    %7 = vector.extract_strided_slice %4 {offsets = [0, 128], sizes = [8, 128], strides = [1, 1]} : vector<8x256xf32> to vector<8x128xf32>
    %cst_9 = arith.constant 0.000000e+00 : f32
    %8 = vector.broadcast %cst_9 : f32 to vector<8x128xf32>
    %9 = vector.extract_strided_slice %5 {offsets = [0, 0], sizes = [8, 16], strides = [1, 1]} : vector<8x128xf32> to vector<8x16xf32>
    %10 = vector.extract_strided_slice %6 {offsets = [0, 0], sizes = [8, 16], strides = [1, 1]} : vector<8x128xf32> to vector<8x16xf32>
    %11 = vector.extract_strided_slice %7 {offsets = [0, 0], sizes = [8, 16], strides = [1, 1]} : vector<8x128xf32> to vector<8x16xf32>
    "tpu.trace_start"() <{level = 10 : i32, message = "qd,kd->qk"}> : () -> ()
    %cst_10 = arith.constant dense<0.000000e+00> : vector<8x8xf32>
    %12 = tpu.matmul %9, %10, %cst_10 {dimension_numbers = #tpu.dot_dimension_numbers<[1], [1], [0], [0], [0, 0, 1, 0], [], []>} : vector<8x16xf32>, vector<8x16xf32>, vector<8x8xf32> -> vector<8x8xf32>
    "tpu.trace_stop"() : () -> ()
    %cst_11 = arith.constant 0.0883883461 : f32
    %13 = vector.broadcast %cst_11 : f32 to vector<8x8xf32>
    %14 = arith.mulf %12, %13 : vector<8x8xf32>
    %cst_12 = arith.constant dense<0xFF800000> : vector<8xf32>
    %15 = vector.multi_reduction <maximumf>, %14, %cst_12 [1] : vector<8x8xf32> to vector<8xf32>
    %16 = vector.shape_cast %15 : vector<8xf32> to vector<8x1xf32>
    %17 = vector.broadcast %16 : vector<8x1xf32> to vector<8x8xf32>
    %18 = arith.subf %14, %17 : vector<8x8xf32>
    %19 = math.exp %18 : vector<8x8xf32>
    %cst_13 = arith.constant dense<0.000000e+00> : vector<8xf32>
    %20 = vector.multi_reduction <add>, %19, %cst_13 [1] : vector<8x8xf32> to vector<8xf32>
    %21 = vector.shape_cast %20 : vector<8xf32> to vector<8x1xf32>
    %22 = tpu.reciprocal %21 {approx = true} : vector<8x1xf32> -> vector<8x1xf32>
    %23 = vector.broadcast %22 : vector<8x1xf32> to vector<8x8xf32>
    %24 = arith.mulf %19, %23 : vector<8x8xf32>
    %cst_14 = arith.constant dense<0.000000e+00> : vector<8x16xf32>
    %25 = tpu.matmul %24, %11, %cst_14 {dimension_numbers = #tpu.dot_dimension_numbers<[1], [0], [0], [1], [0, 0, 1, 1], [], []>} : vector<8x8xf32>, vector<8x16xf32>, vector<8x16xf32> -> vector<8x16xf32>
    %26 = vector.extract_strided_slice %1 {offsets = [0, 0], sizes = [16, 128], strides = [1, 1]} : vector<128x128xf32> to vector<16x128xf32>
    %cst_15 = arith.constant dense<0.000000e+00> : vector<8x128xf32>
    %27 = tpu.matmul %25, %26, %cst_15 {dimension_numbers = #tpu.dot_dimension_numbers<[1], [0], [0], [1], [0, 0, 1, 1], [], []>} : vector<8x16xf32>, vector<16x128xf32>, vector<8x128xf32> -> vector<8x128xf32>
    %28 = arith.addf %8, %27 : vector<8x128xf32>
    %29 = vector.extract_strided_slice %5 {offsets = [0, 16], sizes = [8, 16], strides = [1, 1]} : vector<8x128xf32> to vector<8x16xf32>
    %30 = vector.extract_strided_slice %6 {offsets = [0, 16], sizes = [8, 16], strides = [1, 1]} : vector<8x128xf32> to vector<8x16xf32>
    %31 = vector.extract_strided_slice %7 {offsets = [0, 16], sizes = [8, 16], strides = [1, 1]} : vector<8x128xf32> to vector<8x16xf32>
    "tpu.trace_start"() <{level = 10 : i32, message = "qd,kd->qk"}> : () -> ()
    %cst_16 = arith.constant dense<0.000000e+00> : vector<8x8xf32>
    %32 = tpu.matmul %29, %30, %cst_16 {dimension_numbers = #tpu.dot_dimension_numbers<[1], [1], [0], [0], [0, 0, 1, 0], [], []>} : vector<8x16xf32>, vector<8x16xf32>, vector<8x8xf32> -> vector<8x8xf32>
    "tpu.trace_stop"() : () -> ()
    %cst_17 = arith.constant 0.0883883461 : f32
    %33 = vector.broadcast %cst_17 : f32 to vector<8x8xf32>
    %34 = arith.mulf %32, %33 : vector<8x8xf32>
    %cst_18 = arith.constant dense<0xFF800000> : vector<8xf32>
    %35 = vector.multi_reduction <maximumf>, %34, %cst_18 [1] : vector<8x8xf32> to vector<8xf32>
    %36 = vector.shape_cast %35 : vector<8xf32> to vector<8x1xf32>
    %37 = vector.broadcast %36 : vector<8x1xf32> to vector<8x8xf32>
    %38 = arith.subf %34, %37 : vector<8x8xf32>
    %39 = math.exp %38 : vector<8x8xf32>
    %cst_19 = arith.constant dense<0.000000e+00> : vector<8xf32>
    %40 = vector.multi_reduction <add>, %39, %cst_19 [1] : vector<8x8xf32> to vector<8xf32>
    %41 = vector.shape_cast %40 : vector<8xf32> to vector<8x1xf32>
    %42 = tpu.reciprocal %41 {approx = true} : vector<8x1xf32> -> vector<8x1xf32>
    %43 = vector.broadcast %42 : vector<8x1xf32> to vector<8x8xf32>
    %44 = arith.mulf %39, %43 : vector<8x8xf32>
    %cst_20 = arith.constant dense<0.000000e+00> : vector<8x16xf32>
    %45 = tpu.matmul %44, %31, %cst_20 {dimension_numbers = #tpu.dot_dimension_numbers<[1], [0], [0], [1], [0, 0, 1, 1], [], []>} : vector<8x8xf32>, vector<8x16xf32>, vector<8x16xf32> -> vector<8x16xf32>
    %46 = vector.extract_strided_slice %1 {offsets = [16, 0], sizes = [16, 128], strides = [1, 1]} : vector<128x128xf32> to vector<16x128xf32>
    %cst_21 = arith.constant dense<0.000000e+00> : vector<8x128xf32>
    %47 = tpu.matmul %45, %46, %cst_21 {dimension_numbers = #tpu.dot_dimension_numbers<[1], [0], [0], [1], [0, 0, 1, 1], [], []>} : vector<8x16xf32>, vector<16x128xf32>, vector<8x128xf32> -> vector<8x128xf32>
    %48 = arith.addf %28, %47 : vector<8x128xf32>
    %49 = vector.extract_strided_slice %5 {offsets = [0, 32], sizes = [8, 16], strides = [1, 1]} : vector<8x128xf32> to vector<8x16xf32>
    %50 = vector.extract_strided_slice %6 {offsets = [0, 32], sizes = [8, 16], strides = [1, 1]} : vector<8x128xf32> to vector<8x16xf32>
    %51 = vector.extract_strided_slice %7 {offsets = [0, 32], sizes = [8, 16], strides = [1, 1]} : vector<8x128xf32> to vector<8x16xf32>
    "tpu.trace_start"() <{level = 10 : i32, message = "qd,kd->qk"}> : () -> ()
    %cst_22 = arith.constant dense<0.000000e+00> : vector<8x8xf32>
    %52 = tpu.matmul %49, %50, %cst_22 {dimension_numbers = #tpu.dot_dimension_numbers<[1], [1], [0], [0], [0, 0, 1, 0], [], []>} : vector<8x16xf32>, vector<8x16xf32>, vector<8x8xf32> -> vector<8x8xf32>
    "tpu.trace_stop"() : () -> ()
    %cst_23 = arith.constant 0.0883883461 : f32
    %53 = vector.broadcast %cst_23 : f32 to vector<8x8xf32>
    %54 = arith.mulf %52, %53 : vector<8x8xf32>
    %cst_24 = arith.constant dense<0xFF800000> : vector<8xf32>
    %55 = vector.multi_reduction <maximumf>, %54, %cst_24 [1] : vector<8x8xf32> to vector<8xf32>
    %56 = vector.shape_cast %55 : vector<8xf32> to vector<8x1xf32>
    %57 = vector.broadcast %56 : vector<8x1xf32> to vector<8x8xf32>
    %58 = arith.subf %54, %57 : vector<8x8xf32>
    %59 = math.exp %58 : vector<8x8xf32>
    %cst_25 = arith.constant dense<0.000000e+00> : vector<8xf32>
    %60 = vector.multi_reduction <add>, %59, %cst_25 [1] : vector<8x8xf32> to vector<8xf32>
    %61 = vector.shape_cast %60 : vector<8xf32> to vector<8x1xf32>
    %62 = tpu.reciprocal %61 {approx = true} : vector<8x1xf32> -> vector<8x1xf32>
    %63 = vector.broadcast %62 : vector<8x1xf32> to vector<8x8xf32>
    %64 = arith.mulf %59, %63 : vector<8x8xf32>
    %cst_26 = arith.constant dense<0.000000e+00> : vector<8x16xf32>
    %65 = tpu.matmul %64, %51, %cst_26 {dimension_numbers = #tpu.dot_dimension_numbers<[1], [0], [0], [1], [0, 0, 1, 1], [], []>} : vector<8x8xf32>, vector<8x16xf32>, vector<8x16xf32> -> vector<8x16xf32>
    %66 = vector.extract_strided_slice %1 {offsets = [32, 0], sizes = [16, 128], strides = [1, 1]} : vector<128x128xf32> to vector<16x128xf32>
    %cst_27 = arith.constant dense<0.000000e+00> : vector<8x128xf32>
    %67 = tpu.matmul %65, %66, %cst_27 {dimension_numbers = #tpu.dot_dimension_numbers<[1], [0], [0], [1], [0, 0, 1, 1], [], []>} : vector<8x16xf32>, vector<16x128xf32>, vector<8x128xf32> -> vector<8x128xf32>
    %68 = arith.addf %48, %67 : vector<8x128xf32>
    %69 = vector.extract_strided_slice %5 {offsets = [0, 48], sizes = [8, 16], strides = [1, 1]} : vector<8x128xf32> to vector<8x16xf32>
    %70 = vector.extract_strided_slice %6 {offsets = [0, 48], sizes = [8, 16], strides = [1, 1]} : vector<8x128xf32> to vector<8x16xf32>
    %71 = vector.extract_strided_slice %7 {offsets = [0, 48], sizes = [8, 16], strides = [1, 1]} : vector<8x128xf32> to vector<8x16xf32>
    "tpu.trace_start"() <{level = 10 : i32, message = "qd,kd->qk"}> : () -> ()
    %cst_28 = arith.constant dense<0.000000e+00> : vector<8x8xf32>
    %72 = tpu.matmul %69, %70, %cst_28 {dimension_numbers = #tpu.dot_dimension_numbers<[1], [1], [0], [0], [0, 0, 1, 0], [], []>} : vector<8x16xf32>, vector<8x16xf32>, vector<8x8xf32> -> vector<8x8xf32>
    "tpu.trace_stop"() : () -> ()
    %cst_29 = arith.constant 0.0883883461 : f32
    %73 = vector.broadcast %cst_29 : f32 to vector<8x8xf32>
    %74 = arith.mulf %72, %73 : vector<8x8xf32>
    %cst_30 = arith.constant dense<0xFF800000> : vector<8xf32>
    %75 = vector.multi_reduction <maximumf>, %74, %cst_30 [1] : vector<8x8xf32> to vector<8xf32>
    %76 = vector.shape_cast %75 : vector<8xf32> to vector<8x1xf32>
    %77 = vector.broadcast %76 : vector<8x1xf32> to vector<8x8xf32>
    %78 = arith.subf %74, %77 : vector<8x8xf32>
    %79 = math.exp %78 : vector<8x8xf32>
    %cst_31 = arith.constant dense<0.000000e+00> : vector<8xf32>
    %80 = vector.multi_reduction <add>, %79, %cst_31 [1] : vector<8x8xf32> to vector<8xf32>
    %81 = vector.shape_cast %80 : vector<8xf32> to vector<8x1xf32>
    %82 = tpu.reciprocal %81 {approx = true} : vector<8x1xf32> -> vector<8x1xf32>
    %83 = vector.broadcast %82 : vector<8x1xf32> to vector<8x8xf32>
    %84 = arith.mulf %79, %83 : vector<8x8xf32>
    %cst_32 = arith.constant dense<0.000000e+00> : vector<8x16xf32>
    %85 = tpu.matmul %84, %71, %cst_32 {dimension_numbers = #tpu.dot_dimension_numbers<[1], [0], [0], [1], [0, 0, 1, 1], [], []>} : vector<8x8xf32>, vector<8x16xf32>, vector<8x16xf32> -> vector<8x16xf32>
    %86 = vector.extract_strided_slice %1 {offsets = [48, 0], sizes = [16, 128], strides = [1, 1]} : vector<128x128xf32> to vector<16x128xf32>
    %cst_33 = arith.constant dense<0.000000e+00> : vector<8x128xf32>
    %87 = tpu.matmul %85, %86, %cst_33 {dimension_numbers = #tpu.dot_dimension_numbers<[1], [0], [0], [1], [0, 0, 1, 1], [], []>} : vector<8x16xf32>, vector<16x128xf32>, vector<8x128xf32> -> vector<8x128xf32>
    %88 = arith.addf %68, %87 : vector<8x128xf32>
    %89 = vector.extract_strided_slice %5 {offsets = [0, 64], sizes = [8, 16], strides = [1, 1]} : vector<8x128xf32> to vector<8x16xf32>
    %90 = vector.extract_strided_slice %6 {offsets = [0, 64], sizes = [8, 16], strides = [1, 1]} : vector<8x128xf32> to vector<8x16xf32>
    %91 = vector.extract_strided_slice %7 {offsets = [0, 64], sizes = [8, 16], strides = [1, 1]} : vector<8x128xf32> to vector<8x16xf32>
    "tpu.trace_start"() <{level = 10 : i32, message = "qd,kd->qk"}> : () -> ()
    %cst_34 = arith.constant dense<0.000000e+00> : vector<8x8xf32>
    %92 = tpu.matmul %89, %90, %cst_34 {dimension_numbers = #tpu.dot_dimension_numbers<[1], [1], [0], [0], [0, 0, 1, 0], [], []>} : vector<8x16xf32>, vector<8x16xf32>, vector<8x8xf32> -> vector<8x8xf32>
    "tpu.trace_stop"() : () -> ()
    %cst_35 = arith.constant 0.0883883461 : f32
    %93 = vector.broadcast %cst_35 : f32 to vector<8x8xf32>
    %94 = arith.mulf %92, %93 : vector<8x8xf32>
    %cst_36 = arith.constant dense<0xFF800000> : vector<8xf32>
    %95 = vector.multi_reduction <maximumf>, %94, %cst_36 [1] : vector<8x8xf32> to vector<8xf32>
    %96 = vector.shape_cast %95 : vector<8xf32> to vector<8x1xf32>
    %97 = vector.broadcast %96 : vector<8x1xf32> to vector<8x8xf32>
    %98 = arith.subf %94, %97 : vector<8x8xf32>
    %99 = math.exp %98 : vector<8x8xf32>
    %cst_37 = arith.constant dense<0.000000e+00> : vector<8xf32>
    %100 = vector.multi_reduction <add>, %99, %cst_37 [1] : vector<8x8xf32> to vector<8xf32>
    %101 = vector.shape_cast %100 : vector<8xf32> to vector<8x1xf32>
    %102 = tpu.reciprocal %101 {approx = true} : vector<8x1xf32> -> vector<8x1xf32>
    %103 = vector.broadcast %102 : vector<8x1xf32> to vector<8x8xf32>
    %104 = arith.mulf %99, %103 : vector<8x8xf32>
    %cst_38 = arith.constant dense<0.000000e+00> : vector<8x16xf32>
    %105 = tpu.matmul %104, %91, %cst_38 {dimension_numbers = #tpu.dot_dimension_numbers<[1], [0], [0], [1], [0, 0, 1, 1], [], []>} : vector<8x8xf32>, vector<8x16xf32>, vector<8x16xf32> -> vector<8x16xf32>
    %106 = vector.extract_strided_slice %1 {offsets = [64, 0], sizes = [16, 128], strides = [1, 1]} : vector<128x128xf32> to vector<16x128xf32>
    %cst_39 = arith.constant dense<0.000000e+00> : vector<8x128xf32>
    %107 = tpu.matmul %105, %106, %cst_39 {dimension_numbers = #tpu.dot_dimension_numbers<[1], [0], [0], [1], [0, 0, 1, 1], [], []>} : vector<8x16xf32>, vector<16x128xf32>, vector<8x128xf32> -> vector<8x128xf32>
    %108 = arith.addf %88, %107 : vector<8x128xf32>
    %109 = vector.extract_strided_slice %5 {offsets = [0, 80], sizes = [8, 16], strides = [1, 1]} : vector<8x128xf32> to vector<8x16xf32>
    %110 = vector.extract_strided_slice %6 {offsets = [0, 80], sizes = [8, 16], strides = [1, 1]} : vector<8x128xf32> to vector<8x16xf32>
    %111 = vector.extract_strided_slice %7 {offsets = [0, 80], sizes = [8, 16], strides = [1, 1]} : vector<8x128xf32> to vector<8x16xf32>
    "tpu.trace_start"() <{level = 10 : i32, message = "qd,kd->qk"}> : () -> ()
    %cst_40 = arith.constant dense<0.000000e+00> : vector<8x8xf32>
    %112 = tpu.matmul %109, %110, %cst_40 {dimension_numbers = #tpu.dot_dimension_numbers<[1], [1], [0], [0], [0, 0, 1, 0], [], []>} : vector<8x16xf32>, vector<8x16xf32>, vector<8x8xf32> -> vector<8x8xf32>
    "tpu.trace_stop"() : () -> ()
    %cst_41 = arith.constant 0.0883883461 : f32
    %113 = vector.broadcast %cst_41 : f32 to vector<8x8xf32>
    %114 = arith.mulf %112, %113 : vector<8x8xf32>
    %cst_42 = arith.constant dense<0xFF800000> : vector<8xf32>
    %115 = vector.multi_reduction <maximumf>, %114, %cst_42 [1] : vector<8x8xf32> to vector<8xf32>
    %116 = vector.shape_cast %115 : vector<8xf32> to vector<8x1xf32>
    %117 = vector.broadcast %116 : vector<8x1xf32> to vector<8x8xf32>
    %118 = arith.subf %114, %117 : vector<8x8xf32>
    %119 = math.exp %118 : vector<8x8xf32>
    %cst_43 = arith.constant dense<0.000000e+00> : vector<8xf32>
    %120 = vector.multi_reduction <add>, %119, %cst_43 [1] : vector<8x8xf32> to vector<8xf32>
    %121 = vector.shape_cast %120 : vector<8xf32> to vector<8x1xf32>
    %122 = tpu.reciprocal %121 {approx = true} : vector<8x1xf32> -> vector<8x1xf32>
    %123 = vector.broadcast %122 : vector<8x1xf32> to vector<8x8xf32>
    %124 = arith.mulf %119, %123 : vector<8x8xf32>
    %cst_44 = arith.constant dense<0.000000e+00> : vector<8x16xf32>
    %125 = tpu.matmul %124, %111, %cst_44 {dimension_numbers = #tpu.dot_dimension_numbers<[1], [0], [0], [1], [0, 0, 1, 1], [], []>} : vector<8x8xf32>, vector<8x16xf32>, vector<8x16xf32> -> vector<8x16xf32>
    %126 = vector.extract_strided_slice %1 {offsets = [80, 0], sizes = [16, 128], strides = [1, 1]} : vector<128x128xf32> to vector<16x128xf32>
    %cst_45 = arith.constant dense<0.000000e+00> : vector<8x128xf32>
    %127 = tpu.matmul %125, %126, %cst_45 {dimension_numbers = #tpu.dot_dimension_numbers<[1], [0], [0], [1], [0, 0, 1, 1], [], []>} : vector<8x16xf32>, vector<16x128xf32>, vector<8x128xf32> -> vector<8x128xf32>
    %128 = arith.addf %108, %127 : vector<8x128xf32>
    %129 = vector.extract_strided_slice %5 {offsets = [0, 96], sizes = [8, 16], strides = [1, 1]} : vector<8x128xf32> to vector<8x16xf32>
    %130 = vector.extract_strided_slice %6 {offsets = [0, 96], sizes = [8, 16], strides = [1, 1]} : vector<8x128xf32> to vector<8x16xf32>
    %131 = vector.extract_strided_slice %7 {offsets = [0, 96], sizes = [8, 16], strides = [1, 1]} : vector<8x128xf32> to vector<8x16xf32>
    "tpu.trace_start"() <{level = 10 : i32, message = "qd,kd->qk"}> : () -> ()
    %cst_46 = arith.constant dense<0.000000e+00> : vector<8x8xf32>
    %132 = tpu.matmul %129, %130, %cst_46 {dimension_numbers = #tpu.dot_dimension_numbers<[1], [1], [0], [0], [0, 0, 1, 0], [], []>} : vector<8x16xf32>, vector<8x16xf32>, vector<8x8xf32> -> vector<8x8xf32>
    "tpu.trace_stop"() : () -> ()
    %cst_47 = arith.constant 0.0883883461 : f32
    %133 = vector.broadcast %cst_47 : f32 to vector<8x8xf32>
    %134 = arith.mulf %132, %133 : vector<8x8xf32>
    %cst_48 = arith.constant dense<0xFF800000> : vector<8xf32>
    %135 = vector.multi_reduction <maximumf>, %134, %cst_48 [1] : vector<8x8xf32> to vector<8xf32>
    %136 = vector.shape_cast %135 : vector<8xf32> to vector<8x1xf32>
    %137 = vector.broadcast %136 : vector<8x1xf32> to vector<8x8xf32>
    %138 = arith.subf %134, %137 : vector<8x8xf32>
    %139 = math.exp %138 : vector<8x8xf32>
    %cst_49 = arith.constant dense<0.000000e+00> : vector<8xf32>
    %140 = vector.multi_reduction <add>, %139, %cst_49 [1] : vector<8x8xf32> to vector<8xf32>
    %141 = vector.shape_cast %140 : vector<8xf32> to vector<8x1xf32>
    %142 = tpu.reciprocal %141 {approx = true} : vector<8x1xf32> -> vector<8x1xf32>
    %143 = vector.broadcast %142 : vector<8x1xf32> to vector<8x8xf32>
    %144 = arith.mulf %139, %143 : vector<8x8xf32>
    %cst_50 = arith.constant dense<0.000000e+00> : vector<8x16xf32>
    %145 = tpu.matmul %144, %131, %cst_50 {dimension_numbers = #tpu.dot_dimension_numbers<[1], [0], [0], [1], [0, 0, 1, 1], [], []>} : vector<8x8xf32>, vector<8x16xf32>, vector<8x16xf32> -> vector<8x16xf32>
    %146 = vector.extract_strided_slice %1 {offsets = [96, 0], sizes = [16, 128], strides = [1, 1]} : vector<128x128xf32> to vector<16x128xf32>
    %cst_51 = arith.constant dense<0.000000e+00> : vector<8x128xf32>
    %147 = tpu.matmul %145, %146, %cst_51 {dimension_numbers = #tpu.dot_dimension_numbers<[1], [0], [0], [1], [0, 0, 1, 1], [], []>} : vector<8x16xf32>, vector<16x128xf32>, vector<8x128xf32> -> vector<8x128xf32>
    %148 = arith.addf %128, %147 : vector<8x128xf32>
    %149 = vector.extract_strided_slice %5 {offsets = [0, 112], sizes = [8, 16], strides = [1, 1]} : vector<8x128xf32> to vector<8x16xf32>
    %150 = vector.extract_strided_slice %6 {offsets = [0, 112], sizes = [8, 16], strides = [1, 1]} : vector<8x128xf32> to vector<8x16xf32>
    %151 = vector.extract_strided_slice %7 {offsets = [0, 112], sizes = [8, 16], strides = [1, 1]} : vector<8x128xf32> to vector<8x16xf32>
    "tpu.trace_start"() <{level = 10 : i32, message = "qd,kd->qk"}> : () -> ()
    %cst_52 = arith.constant dense<0.000000e+00> : vector<8x8xf32>
    %152 = tpu.matmul %149, %150, %cst_52 {dimension_numbers = #tpu.dot_dimension_numbers<[1], [1], [0], [0], [0, 0, 1, 0], [], []>} : vector<8x16xf32>, vector<8x16xf32>, vector<8x8xf32> -> vector<8x8xf32>
    "tpu.trace_stop"() : () -> ()
    %cst_53 = arith.constant 0.0883883461 : f32
    %153 = vector.broadcast %cst_53 : f32 to vector<8x8xf32>
    %154 = arith.mulf %152, %153 : vector<8x8xf32>
    %cst_54 = arith.constant dense<0xFF800000> : vector<8xf32>
    %155 = vector.multi_reduction <maximumf>, %154, %cst_54 [1] : vector<8x8xf32> to vector<8xf32>
    %156 = vector.shape_cast %155 : vector<8xf32> to vector<8x1xf32>
    %157 = vector.broadcast %156 : vector<8x1xf32> to vector<8x8xf32>
    %158 = arith.subf %154, %157 : vector<8x8xf32>
    %159 = math.exp %158 : vector<8x8xf32>
    %cst_55 = arith.constant dense<0.000000e+00> : vector<8xf32>
    %160 = vector.multi_reduction <add>, %159, %cst_55 [1] : vector<8x8xf32> to vector<8xf32>
    %161 = vector.shape_cast %160 : vector<8xf32> to vector<8x1xf32>
    %162 = tpu.reciprocal %161 {approx = true} : vector<8x1xf32> -> vector<8x1xf32>
    %163 = vector.broadcast %162 : vector<8x1xf32> to vector<8x8xf32>
    %164 = arith.mulf %159, %163 : vector<8x8xf32>
    %cst_56 = arith.constant dense<0.000000e+00> : vector<8x16xf32>
    %165 = tpu.matmul %164, %151, %cst_56 {dimension_numbers = #tpu.dot_dimension_numbers<[1], [0], [0], [1], [0, 0, 1, 1], [], []>} : vector<8x8xf32>, vector<8x16xf32>, vector<8x16xf32> -> vector<8x16xf32>
    %166 = vector.extract_strided_slice %1 {offsets = [112, 0], sizes = [16, 128], strides = [1, 1]} : vector<128x128xf32> to vector<16x128xf32>
    %cst_57 = arith.constant dense<0.000000e+00> : vector<8x128xf32>
    %167 = tpu.matmul %165, %166, %cst_57 {dimension_numbers = #tpu.dot_dimension_numbers<[1], [0], [0], [1], [0, 0, 1, 1], [], []>} : vector<8x16xf32>, vector<16x128xf32>, vector<8x128xf32> -> vector<8x128xf32>
    %168 = arith.addf %148, %167 : vector<8x128xf32>
    %169 = vector.broadcast %2 : vector<1x128xf32> to vector<8x128xf32>
    %170 = arith.addf %168, %169 : vector<8x128xf32>
    %c0_58 = arith.constant 0 : index
    %c0_59 = arith.constant 0 : index
    %171 = vector.load %arg6[%c0_58, %c0_59] : memref<8x128xf32, #tpu.memory_space<vmem>>, vector<8x128xf32>
    tpu.vector_store %arg6[%c0_58, %c0_59], %170 {strides = array<i32>} : memref<8x128xf32, #tpu.memory_space<vmem>>, vector<8x128xf32>,
    return
  }
  func.func @transform_0(%arg0: i32) -> (i32, i32) {
    %c0_i32 = arith.constant 0 : i32
    %c0_i32_0 = arith.constant 0 : i32
    return %arg0, %c0_i32 : i32, i32
  }
  func.func @transform_1(%arg0: i32) -> (i32, i32) {
    %c0_i32 = arith.constant 0 : i32
    %c0_i32_0 = arith.constant 0 : i32
    return %arg0, %c0_i32 : i32, i32
  }
  func.func @transform_2(%arg0: i32) -> (i32, i32) {
    %c0_i32 = arith.constant 0 : i32
    %c0_i32_0 = arith.constant 0 : i32
    %c0_i32_1 = arith.constant 0 : i32
    return %c0_i32, %c0_i32_0 : i32, i32
  }
  func.func @transform_3(%arg0: i32) -> (i32, i32) {
    %c0_i32 = arith.constant 0 : i32
    %c0_i32_0 = arith.constant 0 : i32
    %c0_i32_1 = arith.constant 0 : i32
    return %c0_i32, %c0_i32_0 : i32, i32
  }
  func.func @transform_4(%arg0: i32) -> (i32, i32) {
    %c0_i32 = arith.constant 0 : i32
    %c0_i32_0 = arith.constant 0 : i32
    %c0_i32_1 = arith.constant 0 : i32
    return %c0_i32, %c0_i32_0 : i32, i32
  }
  func.func @transform_5(%arg0: i32) -> (i32, i32) {
    %c0_i32 = arith.constant 0 : i32
    %c0_i32_0 = arith.constant 0 : i32
    return %arg0, %c0_i32 : i32, i32
  }
}

</mosaic_0001>

<llo_original>
// kernel: attention_forward.1
$region0: #{attention_forward.1}
  #allocation0 [shape = 'u32[]', space=smem, size = 0x4, offset = 0x4, fixed_abs, tag = 'smem constant byte address 0x4 - core index']
  #allocation1 [shape = 'u32[144,128]{1,0:T(1,128)}', space=vmem, size = 0x12000, scoped, tag = 'internal scratch']
  %s0 = inlined_call_operand.vmem [shape: f32[16,128], index: 0, kind: input, shape index: {}]
  %s1 = inlined_call_operand.vmem [shape: f32[16,128], index: 1, kind: input, shape index: {}]
  %s2 = inlined_call_operand.vmem [shape: f32[128,256], index: 2, kind: input, shape index: {}]
  %s3 = inlined_call_operand.vmem [shape: f32[128,128], index: 3, kind: input, shape index: {}]
  %s4 = inlined_call_operand.vmem [shape: f32[1,128], index: 4, kind: input, shape index: {}]
  %s5 = inlined_call_operand.hbm [shape: f32[16,128], index: 5, kind: output, shape index: {}]
  %s6 = sld [smem:[#allocation0]]
  $region53: #{attention_forward.1} parent=0
    _
  %s8 = ssub.s32 1, %s6
  %s9 = scalar_select 0, %s8, %s6
  $region1: #{attention_forward.1} parent=0
    #allocation2 [shape = 'u8[8192]{0}', space=vmem, size = 0x2000, scoped, tag = 'output window, operand 0']
    #allocation3 [shape = 's32[2]{0}', space=sflag, size = 0x8, scoped, tag = 'scoped memory for attention_forward.1']
    %10 = vsyncpa [#allocation3], 0
    %s11 = scalar_lea.sflag [#allocation3], 1
    %12 = vsyncpa %s11, 0
    loop: start=0, step=1, limit=4
    $region2: #{attention_forward.1} parent=1 // loop_pre_header
      _
    $region3: #{attention_forward.1} parent=1 // loop_header
      %s14 = sphi 0, %s18
      %p15 = scmp.ge.s32.totalorder %s14, 4
      %s24 = sphi 0, %s26
      %s27 = sphi 0, %s24
      %s28 = sphi 0, %s27
      %s44 = sphi 0, %s28
      %s50 = sphi 0, %s52
      %s53 = sphi 0, %s50
      %s54 = sphi 0, %s53
      %s70 = sphi 0, %s54
      %s74 = sphi 0, %s74
      %s76 = sphi 0, %s74
      %s77 = sphi 0, %s76
      %s91 = sphi 0, %s77
      %s95 = sphi 0, %s95
      %s97 = sphi 0, %s95
      %s98 = sphi 0, %s97
      %s112 = sphi 0, %s98
      %s116 = sphi 0, %s116
      %s118 = sphi 0, %s116
      %s119 = sphi 0, %s118
      %s133 = sphi 0, %s119
      %s139 = sphi 0, %s141
      %s142 = sphi 0, %s139
      %s143 = sphi 0, %s142
      %s159 = sphi 0, %s143
    $region4: #{attention_forward.1} parent=1 // loop_header_branch
      %17 = sbr.rel (%p15) target = $region8
    $region5: #{attention_forward.1} parent=1 // loop_body
      %s19 = ssub.s32 %s14, 1
      %s20 = ssub.s32 %s14, 2
      %s21 = sadd.s32 %s14, 1
      %s22 = ssub.s32 %s14, %s21
      %p23 = scmp.eq.s32.totalorder %s22, 0
      %s25 = sadd.s32 %s24, 1
      %s26 = scalar_select %p23, %s24, %s25
      %p29 = pneg %p23
      %p30 = scmp.eq.s32.totalorder %s14, 1
      %p31 = por %p29, %p30
      %p32 = scmp.ne.s32.totalorder %s24, %s27
      %p33 = scmp.eq.s32.totalorder %s14, 0
      %p34 = por %p32, %p33
      %p35 = scmp.ne.s32.totalorder %s24, %s27
      %p36 = scmp.eq.s32.totalorder %s19, 1
      %p37 = por %p35, %p36
      %p38 = scmp.ne.s32.totalorder %s27, %s28
      %p39 = scmp.eq.s32.totalorder %s19, 0
      %p40 = por %p38, %p39
      %p41 = scmp.ne.s32.totalorder %s27, %s28
      %p42 = scmp.eq.s32.totalorder %s20, 1
      %p43 = por %p41, %p42
      %p45 = scmp.ne.s32.totalorder %s28, %s44
      %p46 = scmp.eq.s32.totalorder %s20, 0
      %p47 = por %p45, %p46
      %s48 = ssub.s32 %s14, %s21
      %p49 = scmp.eq.s32.totalorder %s48, 0
      %s51 = sadd.s32 %s50, 1
      %s52 = scalar_select %p49, %s50, %s51
      %p55 = pneg %p49
      %p56 = scmp.eq.s32.totalorder %s14, 1
      %p57 = por %p55, %p56
      %p58 = scmp.ne.s32.totalorder %s50, %s53
      %p59 = scmp.eq.s32.totalorder %s14, 0
      %p60 = por %p58, %p59
      %p61 = scmp.ne.s32.totalorder %s50, %s53
      %p62 = scmp.eq.s32.totalorder %s19, 1
      %p63 = por %p61, %p62
      %p64 = scmp.ne.s32.totalorder %s53, %s54
      %p65 = scmp.eq.s32.totalorder %s19, 0
      %p66 = por %p64, %p65
      %p67 = scmp.ne.s32.totalorder %s53, %s54
      %p68 = scmp.eq.s32.totalorder %s20, 1
      %p69 = por %p67, %p68
      %p71 = scmp.ne.s32.totalorder %s54, %s70
      %p72 = scmp.eq.s32.totalorder %s20, 0
      %p73 = por %p71, %p72
      %s75 = sadd.s32 %s74, 1
      %p78 = scmp.eq.s32.totalorder %s14, 1
      %p79 = scmp.ne.s32.totalorder %s74, %s76
      %p80 = scmp.eq.s32.totalorder %s14, 0
      %p81 = por %p79, %p80
      %p82 = scmp.ne.s32.totalorder %s74, %s76
      %p83 = scmp.eq.s32.totalorder %s19, 1
      %p84 = por %p82, %p83
      %p85 = scmp.ne.s32.totalorder %s76, %s77
      %p86 = scmp.eq.s32.totalorder %s19, 0
      %p87 = por %p85, %p86
      %p88 = scmp.ne.s32.totalorder %s76, %s77
      %p89 = scmp.eq.s32.totalorder %s20, 1
      %p90 = por %p88, %p89
      %p92 = scmp.ne.s32.totalorder %s77, %s91
      %p93 = scmp.eq.s32.totalorder %s20, 0
      %p94 = por %p92, %p93
      %s96 = sadd.s32 %s95, 1
      %p99 = scmp.eq.s32.totalorder %s14, 1
      %p100 = scmp.ne.s32.totalorder %s95, %s97
      %p101 = scmp.eq.s32.totalorder %s14, 0
      %p102 = por %p100, %p101
      %p103 = scmp.ne.s32.totalorder %s95, %s97
      %p104 = scmp.eq.s32.totalorder %s19, 1
      %p105 = por %p103, %p104
      %p106 = scmp.ne.s32.totalorder %s97, %s98
      %p107 = scmp.eq.s32.totalorder %s19, 0
      %p108 = por %p106, %p107
      %p109 = scmp.ne.s32.totalorder %s97, %s98
      %p110 = scmp.eq.s32.totalorder %s20, 1
      %p111 = por %p109, %p110
      %p113 = scmp.ne.s32.totalorder %s98, %s112
      %p114 = scmp.eq.s32.totalorder %s20, 0
      %p115 = por %p113, %p114
      %s117 = sadd.s32 %s116, 1
      %p120 = scmp.eq.s32.totalorder %s14, 1
      %p121 = scmp.ne.s32.totalorder %s116, %s118
      %p122 = scmp.eq.s32.totalorder %s14, 0
      %p123 = por %p121, %p122
      %p124 = scmp.ne.s32.totalorder %s116, %s118
      %p125 = scmp.eq.s32.totalorder %s19, 1
      %p126 = por %p124, %p125
      %p127 = scmp.ne.s32.totalorder %s118, %s119
      %p128 = scmp.eq.s32.totalorder %s19, 0
      %p129 = por %p127, %p128
      %p130 = scmp.ne.s32.totalorder %s118, %s119
      %p131 = scmp.eq.s32.totalorder %s20, 1
      %p132 = por %p130, %p131
      %p134 = scmp.ne.s32.totalorder %s119, %s133
      %p135 = scmp.eq.s32.totalorder %s20, 0
      %p136 = por %p134, %p135
      %s137 = ssub.s32 %s14, %s21
      %p138 = scmp.eq.s32.totalorder %s137, 0
      %s140 = sadd.s32 %s139, 1
      %s141 = scalar_select %p138, %s139, %s140
      %p144 = pneg %p138
      %p145 = scmp.eq.s32.totalorder %s14, 1
      %p146 = por %p144, %p145
      %p147 = scmp.ne.s32.totalorder %s139, %s142
      %p148 = scmp.eq.s32.totalorder %s14, 0
      %p149 = por %p147, %p148
      %p150 = scmp.ne.s32.totalorder %s139, %s142
      %p151 = scmp.eq.s32.totalorder %s19, 1
      %p152 = por %p150, %p151
      %p153 = scmp.ne.s32.totalorder %s142, %s143
      %p154 = scmp.eq.s32.totalorder %s19, 0
      %p155 = por %p153, %p154
      %p156 = scmp.ne.s32.totalorder %s142, %s143
      %p157 = scmp.eq.s32.totalorder %s20, 1
      %p158 = por %p156, %p157
      %p160 = scmp.ne.s32.totalorder %s143, %s159
      %p161 = scmp.eq.s32.totalorder %s20, 0
      %p162 = por %p160, %p161
      %p163 = scmp.le.s32.totalorder 1, %s14
      %p164 = scmp.lt.s32.totalorder %s14, 3
      %p165 = pnand %p163, %p164
      %p166 = pneg %p165
      // Predicated region
      $region9: #{attention_forward.1} parent=5 // pred_check
        _
      $region10: #{attention_forward.1} parent=5 // pred_check_branch
        %168 = sbr.rel (%p165) target = $region12
      $region11: #{attention_forward.1} parent=5 // pred_region
        %s169 = ssub.s32 %s14, 1
        // Predicated region
        $region13: #{attention_forward.1} parent=11 // pred_check
          %p170 = pneg %p87
        $region14: #{attention_forward.1} parent=11 // pred_check_branch
          %172 = sbr.rel (%p170) target = $region16
        $region15: #{attention_forward.1} parent=11 // pred_region
          _
        $region16: #{attention_forward.1} parent=11 // pred_fallthru
          _
        // Predicated region
        $region17: #{attention_forward.1} parent=11 // pred_check
          %p173 = pneg %p108
        $region18: #{attention_forward.1} parent=11 // pred_check_branch
          %175 = sbr.rel (%p173) target = $region20
        $region19: #{attention_forward.1} parent=11 // pred_region
          _
        $region20: #{attention_forward.1} parent=11 // pred_fallthru
          _
        // Predicated region
        $region21: #{attention_forward.1} parent=11 // pred_check
          %p176 = pneg %p129
        $region22: #{attention_forward.1} parent=11 // pred_check_branch
          %178 = sbr.rel (%p176) target = $region24
        $region23: #{attention_forward.1} parent=11 // pred_region
          _
        $region24: #{attention_forward.1} parent=11 // pred_fallthru
          _
      $region12: #{attention_forward.1} parent=5 // pred_fallthru
        _
      %p179 = scmp.lt.s32.totalorder %s14, 2
      // Predicated region
      $region25: #{attention_forward.1} parent=5 // pred_check
        %p180 = pneg %p179
      $region26: #{attention_forward.1} parent=5 // pred_check_branch
        %182 = sbr.rel (%p180) target = $region28
      $region27: #{attention_forward.1} parent=5 // pred_region
        // Predicated region
        $region29: #{attention_forward.1} parent=27 // pred_check
          %p183 = pneg %p34
        $region30: #{attention_forward.1} parent=27 // pred_check_branch
          %185 = sbr.rel (%p183) target = $region32
        $region31: #{attention_forward.1} parent=27 // pred_region
          %p186 = scmp.lt.s32.totalorder %s14, 1
          %s187 = scalar_select %p186, %s14, 1
          %s188 = smul.addr %s187, 8
          %s189 = scalar_lea.vmem %s0, %s188
        $region32: #{attention_forward.1} parent=27 // pred_fallthru
          _
        // Predicated region
        $region33: #{attention_forward.1} parent=27 // pred_check
          %p190 = pneg %p60
        $region34: #{attention_forward.1} parent=27 // pred_check_branch
          %192 = sbr.rel (%p190) target = $region36
        $region35: #{attention_forward.1} parent=27 // pred_region
          %p193 = scmp.lt.s32.totalorder %s14, 1
          %s194 = scalar_select %p193, %s14, 1
          %s195 = smul.addr %s194, 8
          %s196 = scalar_lea.vmem %s1, %s195
        $region36: #{attention_forward.1} parent=27 // pred_fallthru
          _
      $region28: #{attention_forward.1} parent=5 // pred_fallthru
        _
      %p197 = scmp.le.s32.totalorder 1, %s14
      %p198 = scmp.lt.s32.totalorder %s14, 3
      %p199 = pnand %p197, %p198
      %p200 = pneg %p199
      // Predicated region
      $region37: #{attention_forward.1} parent=5 // pred_check
        _
      $region38: #{attention_forward.1} parent=5 // pred_check_branch
        %202 = sbr.rel (%p199) target = $region40
      $region39: #{attention_forward.1} parent=5 // pred_region
        %s203 = ssub.s32 %s14, 1
        %p204 = scmp.lt.s32.totalorder %s19, 1
        %s205 = scalar_select %p204, %s19, 1
        %s206 = smul.addr %s205, 8
        %s207 = scalar_lea.vmem %s0, %s206
        %p208 = pneg %p40
        %p209 = pneg %p37
        %p210 = scmp.lt.s32.totalorder %s19, 1
        %s211 = scalar_select %p210, %s19, 1
        %s212 = smul.addr %s211, 8
        %s213 = scalar_lea.vmem %s1, %s212
        %p214 = pneg %p66
        %p215 = pneg %p63
        %p216 = pneg %p87
        %p217 = pneg %p84
        %p218 = pneg %p108
        %p219 = pneg %p105
        %p220 = pneg %p129
        %p221 = pneg %p126
        %p222 = pneg %p155
        %p223 = pneg %p152
        %s224 = sand.u32 %s142, 1
        %s225 = scalar_lea.sflag [#allocation3], %s224
        %s226 = sand.u32 %s142, 1
        %s227 = smul.addr %s226, 8
        %s228 = scalar_lea.vmem [#allocation2], %s227
        %p229 = scmp.lt.s32.totalorder %s19, 1
        %s230 = scalar_select %p229, %s19, 1
        %s231 = smul.addr %s230, 8
        %s232 = scalar_lea.vmem %s0, %s231
        %p233 = scmp.lt.s32.totalorder %s19, 1
        %s234 = scalar_select %p233, %s19, 1
        %s235 = smul.addr %s234, 8
        %s236 = scalar_lea.vmem %s1, %s235
        %v237 = vld [vmem:[%s2] sm:$0xff]
        %v238 = vld [vmem:[%s2 + $0x8] sm:$0xff]
        %v239 = vld [vmem:[%s2 + $0x10] sm:$0xff]
        %v240 = vld [vmem:[%s2 + $0x18] sm:$0xff]
        %v241 = vld [vmem:[%s2 + $0x20] sm:$0xff]
        %v242 = vld [vmem:[%s2 + $0x28] sm:$0xff]
        %v243 = vld [vmem:[%s2 + $0x30] sm:$0xff]
        %v244 = vld [vmem:[%s2 + $0x38] sm:$0xff]
        %v245 = vld [vmem:[%s2 + $0x40] sm:$0xff]
        %v246 = vld [vmem:[%s2 + $0x48] sm:$0xff]
        %v247 = vld [vmem:[%s2 + $0x50] sm:$0xff]
        %v248 = vld [vmem:[%s2 + $0x58] sm:$0xff]
        %v249 = vld [vmem:[%s2 + $0x60] sm:$0xff]
        %v250 = vld [vmem:[%s2 + $0x68] sm:$0xff]
        %v251 = vld [vmem:[%s2 + $0x70] sm:$0xff]
        %v252 = vld [vmem:[%s2 + $0x78] sm:$0xff]
        %v253 = vld [vmem:[%s2 + $0x80] sm:$0xff]
        %v254 = vld [vmem:[%s2 + $0x88] sm:$0xff]
        %v255 = vld [vmem:[%s2 + $0x90] sm:$0xff]
        %v256 = vld [vmem:[%s2 + $0x98] sm:$0xff]
        %v257 = vld [vmem:[%s2 + $0xa0] sm:$0xff]
        %v258 = vld [vmem:[%s2 + $0xa8] sm:$0xff]
        %v259 = vld [vmem:[%s2 + $0xb0] sm:$0xff]
        %v260 = vld [vmem:[%s2 + $0xb8] sm:$0xff]
        %v261 = vld [vmem:[%s2 + $0xc0] sm:$0xff]
        %v262 = vld [vmem:[%s2 + $0xc8] sm:$0xff]
        %v263 = vld [vmem:[%s2 + $0xd0] sm:$0xff]
        %v264 = vld [vmem:[%s2 + $0xd8] sm:$0xff]
        %v265 = vld [vmem:[%s2 + $0xe0] sm:$0xff]
        %v266 = vld [vmem:[%s2 + $0xe8] sm:$0xff]
        %v267 = vld [vmem:[%s2 + $0xf0] sm:$0xff]
        %v268 = vld [vmem:[%s2 + $0xf8] sm:$0xff]
        %v269 = vld [vmem:[%s3] sm:$0xff]
        %v270 = vld [vmem:[%s3 + $0x8] sm:$0xff]
        %v271 = vld [vmem:[%s3 + $0x10] sm:$0xff]
        %v272 = vld [vmem:[%s3 + $0x18] sm:$0xff]
        %v273 = vld [vmem:[%s3 + $0x20] sm:$0xff]
        %v274 = vld [vmem:[%s3 + $0x28] sm:$0xff]
        %v275 = vld [vmem:[%s3 + $0x30] sm:$0xff]
        %v276 = vld [vmem:[%s3 + $0x38] sm:$0xff]
        %v277 = vld [vmem:[%s3 + $0x40] sm:$0xff]
        %v278 = vld [vmem:[%s3 + $0x48] sm:$0xff]
        %v279 = vld [vmem:[%s3 + $0x50] sm:$0xff]
        %v280 = vld [vmem:[%s3 + $0x58] sm:$0xff]
        %v281 = vld [vmem:[%s3 + $0x60] sm:$0xff]
        %v282 = vld [vmem:[%s3 + $0x68] sm:$0xff]
        %v283 = vld [vmem:[%s3 + $0x70] sm:$0xff]
        %v284 = vld [vmem:[%s3 + $0x78] sm:$0xff]
        %v285 = vld [vmem:[%s4] sm:$0x1]
        %v286 = vld [vmem:[%s236] sm:$0xff]
        %287 = vmatprep.subr.mxu0 %v238
        %288 = vmatpush1.msra.mxu0 %v237
        %289 = vmatprep.subr.mxu0 %v240
        %290 = vmatpush1.msra.mxu0 %v239
        %291 = vmatprep.subr.mxu0 %v242
        %292 = vmatpush1.msra.mxu0 %v241
        %293 = vmatprep.subr.mxu0 %v244
        %294 = vmatpush1.msra.mxu0 %v243
        %295 = vmatprep.subr.mxu0 %v246
        %296 = vmatpush1.msra.mxu0 %v245
        %297 = vmatprep.subr.mxu0 %v248
        %298 = vmatpush1.msra.mxu0 %v247
        %299 = vmatprep.subr.mxu0 %v250
        %300 = vmatpush1.msra.mxu0 %v249
        %301 = vmatprep.subr.mxu0 %v252
        %302 = vmatpush1.msra.mxu0 %v251
        %303 = vmatprep.subr.mxu0 %v254
        %304 = vmatpush1.msra.mxu0 %v253
        %305 = vmatprep.subr.mxu0 %v256
        %306 = vmatpush1.msra.mxu0 %v255
        %307 = vmatprep.subr.mxu0 %v258
        %308 = vmatpush1.msra.mxu0 %v257
        %309 = vmatprep.subr.mxu0 %v260
        %310 = vmatpush1.msra.mxu0 %v259
        %311 = vmatprep.subr.mxu0 %v262
        %312 = vmatpush1.msra.mxu0 %v261
        %313 = vmatprep.subr.mxu0 %v264
        %314 = vmatpush1.msra.mxu0 %v263
        %315 = vmatprep.subr.mxu0 %v266
        %316 = vmatpush1.msra.mxu0 %v265
        %317 = vmatprep.subr.mxu0 %v268
        %318 = vmatpush1.msra.mxu0 %v267
        %319 = vmatprep.subr.mxu0 0.0
        %320 = vmatpush1.msra.mxu0 0.0
        %321 = vmatprep.subr.mxu0 0.0
        %322 = vmatpush1.msra.mxu0 0.0
        %323 = vmatprep.subr.mxu0 0.0
        %324 = vmatpush1.msra.mxu0 0.0
        %325 = vmatprep.subr.mxu0 0.0
        %326 = vmatpush1.msra.mxu0 0.0
        %327 = vmatprep.subr.mxu0 0.0
        %328 = vmatpush1.msra.mxu0 0.0
        %329 = vmatprep.subr.mxu0 0.0
        %330 = vmatpush1.msra.mxu0 0.0
        %331 = vmatprep.subr.mxu0 0.0
        %332 = vmatpush1.msra.mxu0 0.0
        %333 = vmatprep.subr.mxu0 0.0
        %334 = vmatpush1.msra.mxu0 0.0
        %335 = vmatprep.subr.mxu0 0.0
        %336 = vmatpush1.msra.mxu0 0.0
        %337 = vmatprep.subr.mxu0 0.0
        %338 = vmatpush1.msra.mxu0 0.0
        %339 = vmatprep.subr.mxu0 0.0
        %340 = vmatpush1.msra.mxu0 0.0
        %341 = vmatprep.subr.mxu0 0.0
        %342 = vmatpush1.msra.mxu0 0.0
        %343 = vmatprep.subr.mxu0 0.0
        %344 = vmatpush1.msra.mxu0 0.0
        %345 = vmatprep.subr.mxu0 0.0
        %346 = vmatpush1.msra.mxu0 0.0
        %347 = vmatprep.subr.mxu0 0.0
        %348 = vmatpush1.msra.mxu0 0.0
        %349 = vmatprep.subr.mxu0 0.0
        %350 = vmatpush1.msra.mxu0 0.0
        %351 = vmatprep.mubr.f32.mxu0 0.0
        %352 = vmatmul.mubr.f32.gmra.mrb[0].mxu0 %v286
        %v353 = vpop.f32.mrb[0].mxu0
        %v354 = vadd.f32 0.0, %v353
        %v355 = vpop.f32.mrb[0].mxu0
        %v356 = vadd.f32 0.0, %v355
        %357 = vdwg.mxu0
        %v358 = vld [vmem:[%s232] sm:$0xff]
        %vm359 = vcmask 130048
        %v361 = vsel %vm359, %v358, 0
        %v364 = vsel %vm359, %v354, 0
        %366 = vmatprep.subr.mxu0 0.0
        %367 = vmatpush1.xpose.msra.mxu0 %v364
        %368 = vmatprep.subr.mxu0 0.0
        %369 = vmatpush1.xpose.msra.mxu0 0.0
        %370 = vmatprep.subr.mxu0 0.0
        %371 = vmatpush1.xpose.msra.mxu0 0.0
        %372 = vmatprep.subr.mxu0 0.0
        %373 = vmatpush1.xpose.msra.mxu0 0.0
        %374 = vmatprep.subr.mxu0 0.0
        %375 = vmatpush1.xpose.msra.mxu0 0.0
        %376 = vmatprep.subr.mxu0 0.0
        %377 = vmatpush1.xpose.msra.mxu0 0.0
        %378 = vmatprep.subr.mxu0 0.0
        %379 = vmatpush1.xpose.msra.mxu0 0.0
        %380 = vmatprep.subr.mxu0 0.0
        %381 = vmatpush1.xpose.msra.mxu0 0.0
        %382 = vmatprep.subr.mxu0 0.0
        %383 = vmatpush1.xpose.msra.mxu0 0.0
        %384 = vmatprep.subr.mxu0 0.0
        %385 = vmatpush1.xpose.msra.mxu0 0.0
        %386 = vmatprep.subr.mxu0 0.0
        %387 = vmatpush1.xpose.msra.mxu0 0.0
        %388 = vmatprep.subr.mxu0 0.0
        %389 = vmatpush1.xpose.msra.mxu0 0.0
        %390 = vmatprep.subr.mxu0 0.0
        %391 = vmatpush1.xpose.msra.mxu0 0.0
        %392 = vmatprep.subr.mxu0 0.0
        %393 = vmatpush1.xpose.msra.mxu0 0.0
        %394 = vmatprep.subr.mxu0 0.0
        %395 = vmatpush1.xpose.msra.mxu0 0.0
        %396 = vmatprep.subr.mxu0 0.0
        %397 = vmatpush1.xpose.msra.mxu0 0.0
        %398 = vmatprep.subr.mxu0 0.0
        %399 = vmatpush1.xpose.msra.mxu0 0.0
        %400 = vmatprep.subr.mxu0 0.0
        %401 = vmatpush1.xpose.msra.mxu0 0.0
        %402 = vmatprep.subr.mxu0 0.0
        %403 = vmatpush1.xpose.msra.mxu0 0.0
        %404 = vmatprep.subr.mxu0 0.0
        %405 = vmatpush1.xpose.msra.mxu0 0.0
        %406 = vmatprep.subr.mxu0 0.0
        %407 = vmatpush1.xpose.msra.mxu0 0.0
        %408 = vmatprep.subr.mxu0 0.0
        %409 = vmatpush1.xpose.msra.mxu0 0.0
        %410 = vmatprep.subr.mxu0 0.0
        %411 = vmatpush1.xpose.msra.mxu0 0.0
        %412 = vmatprep.subr.mxu0 0.0
        %413 = vmatpush1.xpose.msra.mxu0 0.0
        %414 = vmatprep.subr.mxu0 0.0
        %415 = vmatpush1.xpose.msra.mxu0 0.0
        %416 = vmatprep.subr.mxu0 0.0
        %417 = vmatpush1.xpose.msra.mxu0 0.0
        %418 = vmatprep.subr.mxu0 0.0
        %419 = vmatpush1.xpose.msra.mxu0 0.0
        %420 = vmatprep.subr.mxu0 0.0
        %421 = vmatpush1.xpose.msra.mxu0 0.0
        %422 = vmatprep.subr.mxu0 0.0
        %423 = vmatpush1.xpose.msra.mxu0 0.0
        %424 = vmatprep.subr.mxu0 0.0
        %425 = vmatpush1.xpose.msra.mxu0 0.0
        %426 = vmatprep.subr.mxu0 0.0
        %427 = vmatpush1.xpose.msra.mxu0 0.0
        %428 = vmatprep.subr.mxu0 0.0
        %429 = vmatpush1.xpose.msra.mxu0 0.0
        %430 = vmatprep.mubr.f32.mxu0 0.0
        %431 = vmatmul.mubr.f32.gmra.mrb[0].mxu0 %v361
        %v432 = vpop.f32.mrb[0].mxu0
        %v433 = vadd.f32 0.0, %v432
        %v434 = vpop.f32.mrb[0].mxu0
        %435 = vdwg.mxu0
        %v436 = vmul.f32 %v433, 0.088388346
        %vm437 = vcmask 64512
        %v438 = vsel %vm437, %v436, -inf
        %439 = vmax.xlane.f32.xlu0 %v438
        %v440 = vpop.xlane.xlu0 %439
        %v441 = vsub.f32 %v436, %v440
        %v442 = vmul.f32 %v441, 1.442695
        %v443 = vpow.pop %v442
        %v444 = vsel %vm437, %v443, 0.0
        %445 = vadd.xlane.f32.xlu0 %v444
        %v446 = vpop.xlane.xlu0 %445
        %v447 = vrcp.pop %v446
        %v448 = vmul.f32 %v443, %v447
        %v450 = vsel %vm437, %v448, 0
        %452 = vmatprep.subr.mxu0 0.0
        %453 = vmatpush1.msra.mxu0 %v356
        %454 = vmatprep.subr.mxu0 0.0
        %455 = vmatpush1.msra.mxu0 0.0
        %456 = vmatprep.subr.mxu0 0.0
        %457 = vmatpush1.msra.mxu0 0.0
        %458 = vmatprep.subr.mxu0 0.0
        %459 = vmatpush1.msra.mxu0 0.0
        %460 = vmatprep.subr.mxu0 0.0
        %461 = vmatpush1.msra.mxu0 0.0
        %462 = vmatprep.subr.mxu0 0.0
        %463 = vmatpush1.msra.mxu0 0.0
        %464 = vmatprep.subr.mxu0 0.0
        %465 = vmatpush1.msra.mxu0 0.0
        %466 = vmatprep.subr.mxu0 0.0
        %467 = vmatpush1.msra.mxu0 0.0
        %468 = vmatprep.subr.mxu0 0.0
        %469 = vmatpush1.msra.mxu0 0.0
        %470 = vmatprep.subr.mxu0 0.0
        %471 = vmatpush1.msra.mxu0 0.0
        %472 = vmatprep.subr.mxu0 0.0
        %473 = vmatpush1.msra.mxu0 0.0
        %474 = vmatprep.subr.mxu0 0.0
        %475 = vmatpush1.msra.mxu0 0.0
        %476 = vmatprep.subr.mxu0 0.0
        %477 = vmatpush1.msra.mxu0 0.0
        %478 = vmatprep.subr.mxu0 0.0
        %479 = vmatpush1.msra.mxu0 0.0
        %480 = vmatprep.subr.mxu0 0.0
        %481 = vmatpush1.msra.mxu0 0.0
        %482 = vmatprep.subr.mxu0 0.0
        %483 = vmatpush1.msra.mxu0 0.0
        %484 = vmatprep.subr.mxu0 0.0
        %485 = vmatpush1.msra.mxu0 0.0
        %486 = vmatprep.subr.mxu0 0.0
        %487 = vmatpush1.msra.mxu0 0.0
        %488 = vmatprep.subr.mxu0 0.0
        %489 = vmatpush1.msra.mxu0 0.0
        %490 = vmatprep.subr.mxu0 0.0
        %491 = vmatpush1.msra.mxu0 0.0
        %492 = vmatprep.subr.mxu0 0.0
        %493 = vmatpush1.msra.mxu0 0.0
        %494 = vmatprep.subr.mxu0 0.0
        %495 = vmatpush1.msra.mxu0 0.0
        %496 = vmatprep.subr.mxu0 0.0
        %497 = vmatpush1.msra.mxu0 0.0
        %498 = vmatprep.subr.mxu0 0.0
        %499 = vmatpush1.msra.mxu0 0.0
        %500 = vmatprep.subr.mxu0 0.0
        %501 = vmatpush1.msra.mxu0 0.0
        %502 = vmatprep.subr.mxu0 0.0
        %503 = vmatpush1.msra.mxu0 0.0
        %504 = vmatprep.subr.mxu0 0.0
        %505 = vmatpush1.msra.mxu0 0.0
        %506 = vmatprep.subr.mxu0 0.0
        %507 = vmatpush1.msra.mxu0 0.0
        %508 = vmatprep.subr.mxu0 0.0
        %509 = vmatpush1.msra.mxu0 0.0
        %510 = vmatprep.subr.mxu0 0.0
        %511 = vmatpush1.msra.mxu0 0.0
        %512 = vmatprep.subr.mxu0 0.0
        %513 = vmatpush1.msra.mxu0 0.0
        %514 = vmatprep.subr.mxu0 0.0
        %515 = vmatpush1.msra.mxu0 0.0
        %516 = vmatprep.mubr.f32.mxu0 0.0
        %517 = vmatmul.mubr.f32.gmra.mrb[0].mxu0 %v450
        %v518 = vpop.f32.mrb[0].mxu0
        %v519 = vadd.f32 0.0, %v518
        %v520 = vpop.f32.mrb[0].mxu0
        %521 = vdwg.mxu0
        %522 = vrot.lane.b32.xlu0 %v358, 112
        %v523 = vpop.permute.xlu0 %522
        %524 = vrot.lane.b32.xlu0 %v354, 112
        %v525 = vpop.permute.xlu0 %524
        %v526 = vsel %vm359, %v523, 0
        %v528 = vsel %vm359, %v525, 0
        %530 = vmatprep.subr.mxu0 0.0
        %531 = vmatpush1.xpose.msra.mxu0 %v528
        %532 = vmatprep.subr.mxu0 0.0
        %533 = vmatpush1.xpose.msra.mxu0 0.0
        %534 = vmatprep.subr.mxu0 0.0
        %535 = vmatpush1.xpose.msra.mxu0 0.0
        %536 = vmatprep.subr.mxu0 0.0
        %537 = vmatpush1.xpose.msra.mxu0 0.0
        %538 = vmatprep.subr.mxu0 0.0
        %539 = vmatpush1.xpose.msra.mxu0 0.0
        %540 = vmatprep.subr.mxu0 0.0
        %541 = vmatpush1.xpose.msra.mxu0 0.0
        %542 = vmatprep.subr.mxu0 0.0
        %543 = vmatpush1.xpose.msra.mxu0 0.0
        %544 = vmatprep.subr.mxu0 0.0
        %545 = vmatpush1.xpose.msra.mxu0 0.0
        %546 = vmatprep.subr.mxu0 0.0
        %547 = vmatpush1.xpose.msra.mxu0 0.0
        %548 = vmatprep.subr.mxu0 0.0
        %549 = vmatpush1.xpose.msra.mxu0 0.0
        %550 = vmatprep.subr.mxu0 0.0
        %551 = vmatpush1.xpose.msra.mxu0 0.0
        %552 = vmatprep.subr.mxu0 0.0
        %553 = vmatpush1.xpose.msra.mxu0 0.0
        %554 = vmatprep.subr.mxu0 0.0
        %555 = vmatpush1.xpose.msra.mxu0 0.0
        %556 = vmatprep.subr.mxu0 0.0
        %557 = vmatpush1.xpose.msra.mxu0 0.0
        %558 = vmatprep.subr.mxu0 0.0
        %559 = vmatpush1.xpose.msra.mxu0 0.0
        %560 = vmatprep.subr.mxu0 0.0
        %561 = vmatpush1.xpose.msra.mxu0 0.0
        %562 = vmatprep.subr.mxu0 0.0
        %563 = vmatpush1.xpose.msra.mxu0 0.0
        %564 = vmatprep.subr.mxu0 0.0
        %565 = vmatpush1.xpose.msra.mxu0 0.0
        %566 = vmatprep.subr.mxu0 0.0
        %567 = vmatpush1.xpose.msra.mxu0 0.0
        %568 = vmatprep.subr.mxu0 0.0
        %569 = vmatpush1.xpose.msra.mxu0 0.0
        %570 = vmatprep.subr.mxu0 0.0
        %571 = vmatpush1.xpose.msra.mxu0 0.0
        %572 = vmatprep.subr.mxu0 0.0
        %573 = vmatpush1.xpose.msra.mxu0 0.0
        %574 = vmatprep.subr.mxu0 0.0
        %575 = vmatpush1.xpose.msra.mxu0 0.0
        %576 = vmatprep.subr.mxu0 0.0
        %577 = vmatpush1.xpose.msra.mxu0 0.0
        %578 = vmatprep.subr.mxu0 0.0
        %579 = vmatpush1.xpose.msra.mxu0 0.0
        %580 = vmatprep.subr.mxu0 0.0
        %581 = vmatpush1.xpose.msra.mxu0 0.0
        %582 = vmatprep.subr.mxu0 0.0
        %583 = vmatpush1.xpose.msra.mxu0 0.0
        %584 = vmatprep.subr.mxu0 0.0
        %585 = vmatpush1.xpose.msra.mxu0 0.0
        %586 = vmatprep.subr.mxu0 0.0
        %587 = vmatpush1.xpose.msra.mxu0 0.0
        %588 = vmatprep.subr.mxu0 0.0
        %589 = vmatpush1.xpose.msra.mxu0 0.0
        %590 = vmatprep.subr.mxu0 0.0
        %591 = vmatpush1.xpose.msra.mxu0 0.0
        %592 = vmatprep.subr.mxu0 0.0
        %593 = vmatpush1.xpose.msra.mxu0 0.0
        %594 = vmatprep.mubr.f32.mxu0 0.0
        %595 = vmatmul.mubr.f32.gmra.mrb[0].mxu0 %v526
        %v596 = vpop.f32.mrb[0].mxu0
        %v597 = vadd.f32 0.0, %v596
        %v598 = vpop.f32.mrb[0].mxu0
        %599 = vdwg.mxu0
        %v600 = vmul.f32 %v597, 0.088388346
        %v601 = vsel %vm437, %v600, -inf
        %602 = vmax.xlane.f32.xlu0 %v601
        %v603 = vpop.xlane.xlu0 %602
        %v604 = vsub.f32 %v600, %v603
        %v605 = vmul.f32 %v604, 1.442695
        %v606 = vpow.pop %v605
        %v607 = vsel %vm437, %v606, 0.0
        %608 = vadd.xlane.f32.xlu0 %v607
        %v609 = vpop.xlane.xlu0 %608
        %v610 = vrcp.pop %v609
        %v611 = vmul.f32 %v606, %v610
        %613 = vrot.lane.b32.xlu0 %v356, 112
        %v614 = vpop.permute.xlu0 %613
        %v617 = vsel %vm437, %v611, 0
        %619 = vmatprep.subr.mxu0 0.0
        %620 = vmatpush1.msra.mxu0 %v614
        %621 = vmatprep.subr.mxu0 0.0
        %622 = vmatpush1.msra.mxu0 0.0
        %623 = vmatprep.subr.mxu0 0.0
        %624 = vmatpush1.msra.mxu0 0.0
        %625 = vmatprep.subr.mxu0 0.0
        %626 = vmatpush1.msra.mxu0 0.0
        %627 = vmatprep.subr.mxu0 0.0
        %628 = vmatpush1.msra.mxu0 0.0
        %629 = vmatprep.subr.mxu0 0.0
        %630 = vmatpush1.msra.mxu0 0.0
        %631 = vmatprep.subr.mxu0 0.0
        %632 = vmatpush1.msra.mxu0 0.0
        %633 = vmatprep.subr.mxu0 0.0
        %634 = vmatpush1.msra.mxu0 0.0
        %635 = vmatprep.subr.mxu0 0.0
        %636 = vmatpush1.msra.mxu0 0.0
        %637 = vmatprep.subr.mxu0 0.0
        %638 = vmatpush1.msra.mxu0 0.0
        %639 = vmatprep.subr.mxu0 0.0
        %640 = vmatpush1.msra.mxu0 0.0
        %641 = vmatprep.subr.mxu0 0.0
        %642 = vmatpush1.msra.mxu0 0.0
        %643 = vmatprep.subr.mxu0 0.0
        %644 = vmatpush1.msra.mxu0 0.0
        %645 = vmatprep.subr.mxu0 0.0
        %646 = vmatpush1.msra.mxu0 0.0
        %647 = vmatprep.subr.mxu0 0.0
        %648 = vmatpush1.msra.mxu0 0.0
        %649 = vmatprep.subr.mxu0 0.0
        %650 = vmatpush1.msra.mxu0 0.0
        %651 = vmatprep.subr.mxu0 0.0
        %652 = vmatpush1.msra.mxu0 0.0
        %653 = vmatprep.subr.mxu0 0.0
        %654 = vmatpush1.msra.mxu0 0.0
        %655 = vmatprep.subr.mxu0 0.0
        %656 = vmatpush1.msra.mxu0 0.0
        %657 = vmatprep.subr.mxu0 0.0
        %658 = vmatpush1.msra.mxu0 0.0
        %659 = vmatprep.subr.mxu0 0.0
        %660 = vmatpush1.msra.mxu0 0.0
        %661 = vmatprep.subr.mxu0 0.0
        %662 = vmatpush1.msra.mxu0 0.0
        %663 = vmatprep.subr.mxu0 0.0
        %664 = vmatpush1.msra.mxu0 0.0
        %665 = vmatprep.subr.mxu0 0.0
        %666 = vmatpush1.msra.mxu0 0.0
        %667 = vmatprep.subr.mxu0 0.0
        %668 = vmatpush1.msra.mxu0 0.0
        %669 = vmatprep.subr.mxu0 0.0
        %670 = vmatpush1.msra.mxu0 0.0
        %671 = vmatprep.subr.mxu0 0.0
        %672 = vmatpush1.msra.mxu0 0.0
        %673 = vmatprep.subr.mxu0 0.0
        %674 = vmatpush1.msra.mxu0 0.0
        %675 = vmatprep.subr.mxu0 0.0
        %676 = vmatpush1.msra.mxu0 0.0
        %677 = vmatprep.subr.mxu0 0.0
        %678 = vmatpush1.msra.mxu0 0.0
        %679 = vmatprep.subr.mxu0 0.0
        %680 = vmatpush1.msra.mxu0 0.0
        %681 = vmatprep.subr.mxu0 0.0
        %682 = vmatpush1.msra.mxu0 0.0
        %683 = vmatprep.mubr.f32.mxu0 0.0
        %684 = vmatmul.mubr.f32.gmra.mrb[0].mxu0 %v617
        %v685 = vpop.f32.mrb[0].mxu0
        %v686 = vadd.f32 0.0, %v685
        %v687 = vpop.f32.mrb[0].mxu0
        %688 = vdwg.mxu0
        %v690 = vsel %vm359, %v686, 0
        %692 = vmatprep.subr.mxu0 0.0
        %693 = vmatpush1.msra.mxu0 %v271
        %694 = vmatprep.subr.mxu0 0.0
        %695 = vmatpush1.msra.mxu0 %v272
        %696 = vmatprep.subr.mxu0 0.0
        %697 = vmatpush1.msra.mxu0 0.0
        %698 = vmatprep.subr.mxu0 0.0
        %699 = vmatpush1.msra.mxu0 0.0
        %700 = vmatprep.subr.mxu0 0.0
        %701 = vmatpush1.msra.mxu0 0.0
        %702 = vmatprep.subr.mxu0 0.0
        %703 = vmatpush1.msra.mxu0 0.0
        %704 = vmatprep.subr.mxu0 0.0
        %705 = vmatpush1.msra.mxu0 0.0
        %706 = vmatprep.subr.mxu0 0.0
        %707 = vmatpush1.msra.mxu0 0.0
        %708 = vmatprep.subr.mxu0 0.0
        %709 = vmatpush1.msra.mxu0 0.0
        %710 = vmatprep.subr.mxu0 0.0
        %711 = vmatpush1.msra.mxu0 0.0
        %712 = vmatprep.subr.mxu0 0.0
        %713 = vmatpush1.msra.mxu0 0.0
        %714 = vmatprep.subr.mxu0 0.0
        %715 = vmatpush1.msra.mxu0 0.0
        %716 = vmatprep.subr.mxu0 0.0
        %717 = vmatpush1.msra.mxu0 0.0
        %718 = vmatprep.subr.mxu0 0.0
        %719 = vmatpush1.msra.mxu0 0.0
        %720 = vmatprep.subr.mxu0 0.0
        %721 = vmatpush1.msra.mxu0 0.0
        %722 = vmatprep.subr.mxu0 0.0
        %723 = vmatpush1.msra.mxu0 0.0
        %724 = vmatprep.subr.mxu0 0.0
        %725 = vmatpush1.msra.mxu0 0.0
        %726 = vmatprep.subr.mxu0 0.0
        %727 = vmatpush1.msra.mxu0 0.0
        %728 = vmatprep.subr.mxu0 0.0
        %729 = vmatpush1.msra.mxu0 0.0
        %730 = vmatprep.subr.mxu0 0.0
        %731 = vmatpush1.msra.mxu0 0.0
        %732 = vmatprep.subr.mxu0 0.0
        %733 = vmatpush1.msra.mxu0 0.0
        %734 = vmatprep.subr.mxu0 0.0
        %735 = vmatpush1.msra.mxu0 0.0
        %736 = vmatprep.subr.mxu0 0.0
        %737 = vmatpush1.msra.mxu0 0.0
        %738 = vmatprep.subr.mxu0 0.0
        %739 = vmatpush1.msra.mxu0 0.0
        %740 = vmatprep.subr.mxu0 0.0
        %741 = vmatpush1.msra.mxu0 0.0
        %742 = vmatprep.subr.mxu0 0.0
        %743 = vmatpush1.msra.mxu0 0.0
        %744 = vmatprep.subr.mxu0 0.0
        %745 = vmatpush1.msra.mxu0 0.0
        %746 = vmatprep.subr.mxu0 0.0
        %747 = vmatpush1.msra.mxu0 0.0
        %748 = vmatprep.subr.mxu0 0.0
        %749 = vmatpush1.msra.mxu0 0.0
        %750 = vmatprep.subr.mxu0 0.0
        %751 = vmatpush1.msra.mxu0 0.0
        %752 = vmatprep.subr.mxu0 0.0
        %753 = vmatpush1.msra.mxu0 0.0
        %754 = vmatprep.subr.mxu0 0.0
        %755 = vmatpush1.msra.mxu0 0.0
        %756 = vmatprep.mubr.f32.mxu0 0.0
        %757 = vmatmul.mubr.f32.gmra.mrb[0].mxu0 %v690
        %v758 = vpop.f32.mrb[0].mxu0
        %v759 = vadd.f32 0.0, %v758
        %v760 = vpop.f32.mrb[0].mxu0
        %761 = vdwg.mxu0
        %v763 = vsel %vm359, %v519, 0
        %765 = vmatprep.subr.mxu0 0.0
        %766 = vmatpush1.msra.mxu0 %v269
        %767 = vmatprep.subr.mxu0 0.0
        %768 = vmatpush1.msra.mxu0 %v270
        %769 = vmatprep.subr.mxu0 0.0
        %770 = vmatpush1.msra.mxu0 0.0
        %771 = vmatprep.subr.mxu0 0.0
        %772 = vmatpush1.msra.mxu0 0.0
        %773 = vmatprep.subr.mxu0 0.0
        %774 = vmatpush1.msra.mxu0 0.0
        %775 = vmatprep.subr.mxu0 0.0
        %776 = vmatpush1.msra.mxu0 0.0
        %777 = vmatprep.subr.mxu0 0.0
        %778 = vmatpush1.msra.mxu0 0.0
        %779 = vmatprep.subr.mxu0 0.0
        %780 = vmatpush1.msra.mxu0 0.0
        %781 = vmatprep.subr.mxu0 0.0
        %782 = vmatpush1.msra.mxu0 0.0
        %783 = vmatprep.subr.mxu0 0.0
        %784 = vmatpush1.msra.mxu0 0.0
        %785 = vmatprep.subr.mxu0 0.0
        %786 = vmatpush1.msra.mxu0 0.0
        %787 = vmatprep.subr.mxu0 0.0
        %788 = vmatpush1.msra.mxu0 0.0
        %789 = vmatprep.subr.mxu0 0.0
        %790 = vmatpush1.msra.mxu0 0.0
        %791 = vmatprep.subr.mxu0 0.0
        %792 = vmatpush1.msra.mxu0 0.0
        %793 = vmatprep.subr.mxu0 0.0
        %794 = vmatpush1.msra.mxu0 0.0
        %795 = vmatprep.subr.mxu0 0.0
        %796 = vmatpush1.msra.mxu0 0.0
        %797 = vmatprep.subr.mxu0 0.0
        %798 = vmatpush1.msra.mxu0 0.0
        %799 = vmatprep.subr.mxu0 0.0
        %800 = vmatpush1.msra.mxu0 0.0
        %801 = vmatprep.subr.mxu0 0.0
        %802 = vmatpush1.msra.mxu0 0.0
        %803 = vmatprep.subr.mxu0 0.0
        %804 = vmatpush1.msra.mxu0 0.0
        %805 = vmatprep.subr.mxu0 0.0
        %806 = vmatpush1.msra.mxu0 0.0
        %807 = vmatprep.subr.mxu0 0.0
        %808 = vmatpush1.msra.mxu0 0.0
        %809 = vmatprep.subr.mxu0 0.0
        %810 = vmatpush1.msra.mxu0 0.0
        %811 = vmatprep.subr.mxu0 0.0
        %812 = vmatpush1.msra.mxu0 0.0
        %813 = vmatprep.subr.mxu0 0.0
        %814 = vmatpush1.msra.mxu0 0.0
        %815 = vmatprep.subr.mxu0 0.0
        %816 = vmatpush1.msra.mxu0 0.0
        %817 = vmatprep.subr.mxu0 0.0
        %818 = vmatpush1.msra.mxu0 0.0
        %819 = vmatprep.subr.mxu0 0.0
        %820 = vmatpush1.msra.mxu0 0.0
        %821 = vmatprep.subr.mxu0 0.0
        %822 = vmatpush1.msra.mxu0 0.0
        %823 = vmatprep.subr.mxu0 0.0
        %824 = vmatpush1.msra.mxu0 0.0
        %825 = vmatprep.subr.mxu0 0.0
        %826 = vmatpush1.msra.mxu0 0.0
        %827 = vmatprep.subr.mxu0 0.0
        %828 = vmatpush1.msra.mxu0 0.0
        %829 = vmatprep.mubr.f32.mxu0 0.0
        %830 = vmatmul.mubr.f32.gmra.mrb[0].mxu0 %v763
        %v831 = vpop.f32.mrb[0].mxu0
        %v832 = vadd.f32 %v759, %v831
        %v833 = vpop.f32.mrb[0].mxu0
        %834 = vdwg.mxu0
        %835 = vrot.lane.b32.xlu0 %v358, 96
        %v836 = vpop.permute.xlu0 %835
        %837 = vrot.lane.b32.xlu0 %v354, 96
        %v838 = vpop.permute.xlu0 %837
        %v839 = vsel %vm359, %v836, 0
        %v841 = vsel %vm359, %v838, 0
        %843 = vmatprep.subr.mxu0 0.0
        %844 = vmatpush1.xpose.msra.mxu0 %v841
        %845 = vmatprep.subr.mxu0 0.0
        %846 = vmatpush1.xpose.msra.mxu0 0.0
        %847 = vmatprep.subr.mxu0 0.0
        %848 = vmatpush1.xpose.msra.mxu0 0.0
        %849 = vmatprep.subr.mxu0 0.0
        %850 = vmatpush1.xpose.msra.mxu0 0.0
        %851 = vmatprep.subr.mxu0 0.0
        %852 = vmatpush1.xpose.msra.mxu0 0.0
        %853 = vmatprep.subr.mxu0 0.0
        %854 = vmatpush1.xpose.msra.mxu0 0.0
        %855 = vmatprep.subr.mxu0 0.0
        %856 = vmatpush1.xpose.msra.mxu0 0.0
        %857 = vmatprep.subr.mxu0 0.0
        %858 = vmatpush1.xpose.msra.mxu0 0.0
        %859 = vmatprep.subr.mxu0 0.0
        %860 = vmatpush1.xpose.msra.mxu0 0.0
        %861 = vmatprep.subr.mxu0 0.0
        %862 = vmatpush1.xpose.msra.mxu0 0.0
        %863 = vmatprep.subr.mxu0 0.0
        %864 = vmatpush1.xpose.msra.mxu0 0.0
        %865 = vmatprep.subr.mxu0 0.0
        %866 = vmatpush1.xpose.msra.mxu0 0.0
        %867 = vmatprep.subr.mxu0 0.0
        %868 = vmatpush1.xpose.msra.mxu0 0.0
        %869 = vmatprep.subr.mxu0 0.0
        %870 = vmatpush1.xpose.msra.mxu0 0.0
        %871 = vmatprep.subr.mxu0 0.0
        %872 = vmatpush1.xpose.msra.mxu0 0.0
        %873 = vmatprep.subr.mxu0 0.0
        %874 = vmatpush1.xpose.msra.mxu0 0.0
        %875 = vmatprep.subr.mxu0 0.0
        %876 = vmatpush1.xpose.msra.mxu0 0.0
        %877 = vmatprep.subr.mxu0 0.0
        %878 = vmatpush1.xpose.msra.mxu0 0.0
        %879 = vmatprep.subr.mxu0 0.0
        %880 = vmatpush1.xpose.msra.mxu0 0.0
        %881 = vmatprep.subr.mxu0 0.0
        %882 = vmatpush1.xpose.msra.mxu0 0.0
        %883 = vmatprep.subr.mxu0 0.0
        %884 = vmatpush1.xpose.msra.mxu0 0.0
        %885 = vmatprep.subr.mxu0 0.0
        %886 = vmatpush1.xpose.msra.mxu0 0.0
        %887 = vmatprep.subr.mxu0 0.0
        %888 = vmatpush1.xpose.msra.mxu0 0.0
        %889 = vmatprep.subr.mxu0 0.0
        %890 = vmatpush1.xpose.msra.mxu0 0.0
        %891 = vmatprep.subr.mxu0 0.0
        %892 = vmatpush1.xpose.msra.mxu0 0.0
        %893 = vmatprep.subr.mxu0 0.0
        %894 = vmatpush1.xpose.msra.mxu0 0.0
        %895 = vmatprep.subr.mxu0 0.0
        %896 = vmatpush1.xpose.msra.mxu0 0.0
        %897 = vmatprep.subr.mxu0 0.0
        %898 = vmatpush1.xpose.msra.mxu0 0.0
        %899 = vmatprep.subr.mxu0 0.0
        %900 = vmatpush1.xpose.msra.mxu0 0.0
        %901 = vmatprep.subr.mxu0 0.0
        %902 = vmatpush1.xpose.msra.mxu0 0.0
        %903 = vmatprep.subr.mxu0 0.0
        %904 = vmatpush1.xpose.msra.mxu0 0.0
        %905 = vmatprep.subr.mxu0 0.0
        %906 = vmatpush1.xpose.msra.mxu0 0.0
        %907 = vmatprep.mubr.f32.mxu0 0.0
        %908 = vmatmul.mubr.f32.gmra.mrb[0].mxu0 %v839
        %v909 = vpop.f32.mrb[0].mxu0
        %v910 = vadd.f32 0.0, %v909
        %v911 = vpop.f32.mrb[0].mxu0
        %912 = vdwg.mxu0
        %v913 = vmul.f32 %v910, 0.088388346
        %v914 = vsel %vm437, %v913, -inf
        %915 = vmax.xlane.f32.xlu0 %v914
        %v916 = vpop.xlane.xlu0 %915
        %v917 = vsub.f32 %v913, %v916
        %v918 = vmul.f32 %v917, 1.442695
        %v919 = vpow.pop %v918
        %v920 = vsel %vm437, %v919, 0.0
        %921 = vadd.xlane.f32.xlu0 %v920
        %v922 = vpop.xlane.xlu0 %921
        %v923 = vrcp.pop %v922
        %v924 = vmul.f32 %v919, %v923
        %925 = vrot.lane.b32.xlu0 %v356, 96
        %v926 = vpop.permute.xlu0 %925
        %v929 = vsel %vm437, %v924, 0
        %931 = vmatprep.subr.mxu0 0.0
        %932 = vmatpush1.msra.mxu0 %v926
        %933 = vmatprep.subr.mxu0 0.0
        %934 = vmatpush1.msra.mxu0 0.0
        %935 = vmatprep.subr.mxu0 0.0
        %936 = vmatpush1.msra.mxu0 0.0
        %937 = vmatprep.subr.mxu0 0.0
        %938 = vmatpush1.msra.mxu0 0.0
        %939 = vmatprep.subr.mxu0 0.0
        %940 = vmatpush1.msra.mxu0 0.0
        %941 = vmatprep.subr.mxu0 0.0
        %942 = vmatpush1.msra.mxu0 0.0
        %943 = vmatprep.subr.mxu0 0.0
        %944 = vmatpush1.msra.mxu0 0.0
        %945 = vmatprep.subr.mxu0 0.0
        %946 = vmatpush1.msra.mxu0 0.0
        %947 = vmatprep.subr.mxu0 0.0
        %948 = vmatpush1.msra.mxu0 0.0
        %949 = vmatprep.subr.mxu0 0.0
        %950 = vmatpush1.msra.mxu0 0.0
        %951 = vmatprep.subr.mxu0 0.0
        %952 = vmatpush1.msra.mxu0 0.0
        %953 = vmatprep.subr.mxu0 0.0
        %954 = vmatpush1.msra.mxu0 0.0
        %955 = vmatprep.subr.mxu0 0.0
        %956 = vmatpush1.msra.mxu0 0.0
        %957 = vmatprep.subr.mxu0 0.0
        %958 = vmatpush1.msra.mxu0 0.0
        %959 = vmatprep.subr.mxu0 0.0
        %960 = vmatpush1.msra.mxu0 0.0
        %961 = vmatprep.subr.mxu0 0.0
        %962 = vmatpush1.msra.mxu0 0.0
        %963 = vmatprep.subr.mxu0 0.0
        %964 = vmatpush1.msra.mxu0 0.0
        %965 = vmatprep.subr.mxu0 0.0
        %966 = vmatpush1.msra.mxu0 0.0
        %967 = vmatprep.subr.mxu0 0.0
        %968 = vmatpush1.msra.mxu0 0.0
        %969 = vmatprep.subr.mxu0 0.0
        %970 = vmatpush1.msra.mxu0 0.0
        %971 = vmatprep.subr.mxu0 0.0
        %972 = vmatpush1.msra.mxu0 0.0
        %973 = vmatprep.subr.mxu0 0.0
        %974 = vmatpush1.msra.mxu0 0.0
        %975 = vmatprep.subr.mxu0 0.0
        %976 = vmatpush1.msra.mxu0 0.0
        %977 = vmatprep.subr.mxu0 0.0
        %978 = vmatpush1.msra.mxu0 0.0
        %979 = vmatprep.subr.mxu0 0.0
        %980 = vmatpush1.msra.mxu0 0.0
        %981 = vmatprep.subr.mxu0 0.0
        %982 = vmatpush1.msra.mxu0 0.0
        %983 = vmatprep.subr.mxu0 0.0
        %984 = vmatpush1.msra.mxu0 0.0
        %985 = vmatprep.subr.mxu0 0.0
        %986 = vmatpush1.msra.mxu0 0.0
        %987 = vmatprep.subr.mxu0 0.0
        %988 = vmatpush1.msra.mxu0 0.0
        %989 = vmatprep.subr.mxu0 0.0
        %990 = vmatpush1.msra.mxu0 0.0
        %991 = vmatprep.subr.mxu0 0.0
        %992 = vmatpush1.msra.mxu0 0.0
        %993 = vmatprep.subr.mxu0 0.0
        %994 = vmatpush1.msra.mxu0 0.0
        %995 = vmatprep.mubr.f32.mxu0 0.0
        %996 = vmatmul.mubr.f32.gmra.mrb[0].mxu0 %v929
        %v997 = vpop.f32.mrb[0].mxu0
        %v998 = vadd.f32 0.0, %v997
        %v999 = vpop.f32.mrb[0].mxu0
        %1000 = vdwg.mxu0
        %v1002 = vsel %vm359, %v998, 0
        %1004 = vmatprep.subr.mxu0 0.0
        %1005 = vmatpush1.msra.mxu0 %v273
        %1006 = vmatprep.subr.mxu0 0.0
        %1007 = vmatpush1.msra.mxu0 %v274
        %1008 = vmatprep.subr.mxu0 0.0
        %1009 = vmatpush1.msra.mxu0 0.0
        %1010 = vmatprep.subr.mxu0 0.0
        %1011 = vmatpush1.msra.mxu0 0.0
        %1012 = vmatprep.subr.mxu0 0.0
        %1013 = vmatpush1.msra.mxu0 0.0
        %1014 = vmatprep.subr.mxu0 0.0
        %1015 = vmatpush1.msra.mxu0 0.0
        %1016 = vmatprep.subr.mxu0 0.0
        %1017 = vmatpush1.msra.mxu0 0.0
        %1018 = vmatprep.subr.mxu0 0.0
        %1019 = vmatpush1.msra.mxu0 0.0
        %1020 = vmatprep.subr.mxu0 0.0
        %1021 = vmatpush1.msra.mxu0 0.0
        %1022 = vmatprep.subr.mxu0 0.0
        %1023 = vmatpush1.msra.mxu0 0.0
        %1024 = vmatprep.subr.mxu0 0.0
        %1025 = vmatpush1.msra.mxu0 0.0
        %1026 = vmatprep.subr.mxu0 0.0
        %1027 = vmatpush1.msra.mxu0 0.0
        %1028 = vmatprep.subr.mxu0 0.0
        %1029 = vmatpush1.msra.mxu0 0.0
        %1030 = vmatprep.subr.mxu0 0.0
        %1031 = vmatpush1.msra.mxu0 0.0
        %1032 = vmatprep.subr.mxu0 0.0
        %1033 = vmatpush1.msra.mxu0 0.0
        %1034 = vmatprep.subr.mxu0 0.0
        %1035 = vmatpush1.msra.mxu0 0.0
        %1036 = vmatprep.subr.mxu0 0.0
        %1037 = vmatpush1.msra.mxu0 0.0
        %1038 = vmatprep.subr.mxu0 0.0
        %1039 = vmatpush1.msra.mxu0 0.0
        %1040 = vmatprep.subr.mxu0 0.0
        %1041 = vmatpush1.msra.mxu0 0.0
        %1042 = vmatprep.subr.mxu0 0.0
        %1043 = vmatpush1.msra.mxu0 0.0
        %1044 = vmatprep.subr.mxu0 0.0
        %1045 = vmatpush1.msra.mxu0 0.0
        %1046 = vmatprep.subr.mxu0 0.0
        %1047 = vmatpush1.msra.mxu0 0.0
        %1048 = vmatprep.subr.mxu0 0.0
        %1049 = vmatpush1.msra.mxu0 0.0
        %1050 = vmatprep.subr.mxu0 0.0
        %1051 = vmatpush1.msra.mxu0 0.0
        %1052 = vmatprep.subr.mxu0 0.0
        %1053 = vmatpush1.msra.mxu0 0.0
        %1054 = vmatprep.subr.mxu0 0.0
        %1055 = vmatpush1.msra.mxu0 0.0
        %1056 = vmatprep.subr.mxu0 0.0
        %1057 = vmatpush1.msra.mxu0 0.0
        %1058 = vmatprep.subr.mxu0 0.0
        %1059 = vmatpush1.msra.mxu0 0.0
        %1060 = vmatprep.subr.mxu0 0.0
        %1061 = vmatpush1.msra.mxu0 0.0
        %1062 = vmatprep.subr.mxu0 0.0
        %1063 = vmatpush1.msra.mxu0 0.0
        %1064 = vmatprep.subr.mxu0 0.0
        %1065 = vmatpush1.msra.mxu0 0.0
        %1066 = vmatprep.subr.mxu0 0.0
        %1067 = vmatpush1.msra.mxu0 0.0
        %1068 = vmatprep.mubr.f32.mxu0 0.0
        %1069 = vmatmul.mubr.f32.gmra.mrb[0].mxu0 %v1002
        %v1070 = vpop.f32.mrb[0].mxu0
        %v1071 = vadd.f32 0.0, %v1070
        %v1072 = vpop.f32.mrb[0].mxu0
        %1073 = vdwg.mxu0
        %v1074 = vadd.f32 %v832, %v1071
        %1075 = vrot.lane.b32.xlu0 %v358, 80
        %v1076 = vpop.permute.xlu0 %1075
        %1077 = vrot.lane.b32.xlu0 %v354, 80
        %v1078 = vpop.permute.xlu0 %1077
        %v1079 = vsel %vm359, %v1076, 0
        %v1081 = vsel %vm359, %v1078, 0
        %1083 = vmatprep.subr.mxu0 0.0
        %1084 = vmatpush1.xpose.msra.mxu0 %v1081
        %1085 = vmatprep.subr.mxu0 0.0
        %1086 = vmatpush1.xpose.msra.mxu0 0.0
        %1087 = vmatprep.subr.mxu0 0.0
        %1088 = vmatpush1.xpose.msra.mxu0 0.0
        %1089 = vmatprep.subr.mxu0 0.0
        %1090 = vmatpush1.xpose.msra.mxu0 0.0
        %1091 = vmatprep.subr.mxu0 0.0
        %1092 = vmatpush1.xpose.msra.mxu0 0.0
        %1093 = vmatprep.subr.mxu0 0.0
        %1094 = vmatpush1.xpose.msra.mxu0 0.0
        %1095 = vmatprep.subr.mxu0 0.0
        %1096 = vmatpush1.xpose.msra.mxu0 0.0
        %1097 = vmatprep.subr.mxu0 0.0
        %1098 = vmatpush1.xpose.msra.mxu0 0.0
        %1099 = vmatprep.subr.mxu0 0.0
        %1100 = vmatpush1.xpose.msra.mxu0 0.0
        %1101 = vmatprep.subr.mxu0 0.0
        %1102 = vmatpush1.xpose.msra.mxu0 0.0
        %1103 = vmatprep.subr.mxu0 0.0
        %1104 = vmatpush1.xpose.msra.mxu0 0.0
        %1105 = vmatprep.subr.mxu0 0.0
        %1106 = vmatpush1.xpose.msra.mxu0 0.0
        %1107 = vmatprep.subr.mxu0 0.0
        %1108 = vmatpush1.xpose.msra.mxu0 0.0
        %1109 = vmatprep.subr.mxu0 0.0
        %1110 = vmatpush1.xpose.msra.mxu0 0.0
        %1111 = vmatprep.subr.mxu0 0.0
        %1112 = vmatpush1.xpose.msra.mxu0 0.0
        %1113 = vmatprep.subr.mxu0 0.0
        %1114 = vmatpush1.xpose.msra.mxu0 0.0
        %1115 = vmatprep.subr.mxu0 0.0
        %1116 = vmatpush1.xpose.msra.mxu0 0.0
        %1117 = vmatprep.subr.mxu0 0.0
        %1118 = vmatpush1.xpose.msra.mxu0 0.0
        %1119 = vmatprep.subr.mxu0 0.0
        %1120 = vmatpush1.xpose.msra.mxu0 0.0
        %1121 = vmatprep.subr.mxu0 0.0
        %1122 = vmatpush1.xpose.msra.mxu0 0.0
        %1123 = vmatprep.subr.mxu0 0.0
        %1124 = vmatpush1.xpose.msra.mxu0 0.0
        %1125 = vmatprep.subr.mxu0 0.0
        %1126 = vmatpush1.xpose.msra.mxu0 0.0
        %1127 = vmatprep.subr.mxu0 0.0
        %1128 = vmatpush1.xpose.msra.mxu0 0.0
        %1129 = vmatprep.subr.mxu0 0.0
        %1130 = vmatpush1.xpose.msra.mxu0 0.0
        %1131 = vmatprep.subr.mxu0 0.0
        %1132 = vmatpush1.xpose.msra.mxu0 0.0
        %1133 = vmatprep.subr.mxu0 0.0
        %1134 = vmatpush1.xpose.msra.mxu0 0.0
        %1135 = vmatprep.subr.mxu0 0.0
        %1136 = vmatpush1.xpose.msra.mxu0 0.0
        %1137 = vmatprep.subr.mxu0 0.0
        %1138 = vmatpush1.xpose.msra.mxu0 0.0
        %1139 = vmatprep.subr.mxu0 0.0
        %1140 = vmatpush1.xpose.msra.mxu0 0.0
        %1141 = vmatprep.subr.mxu0 0.0
        %1142 = vmatpush1.xpose.msra.mxu0 0.0
        %1143 = vmatprep.subr.mxu0 0.0
        %1144 = vmatpush1.xpose.msra.mxu0 0.0
        %1145 = vmatprep.subr.mxu0 0.0
        %1146 = vmatpush1.xpose.msra.mxu0 0.0
        %1147 = vmatprep.mubr.f32.mxu0 0.0
        %1148 = vmatmul.mubr.f32.gmra.mrb[0].mxu0 %v1079
        %v1149 = vpop.f32.mrb[0].mxu0
        %v1150 = vadd.f32 0.0, %v1149
        %v1151 = vpop.f32.mrb[0].mxu0
        %1152 = vdwg.mxu0
        %v1153 = vmul.f32 %v1150, 0.088388346
        %v1154 = vsel %vm437, %v1153, -inf
        %1155 = vmax.xlane.f32.xlu0 %v1154
        %v1156 = vpop.xlane.xlu0 %1155
        %v1157 = vsub.f32 %v1153, %v1156
        %v1158 = vmul.f32 %v1157, 1.442695
        %v1159 = vpow.pop %v1158
        %v1160 = vsel %vm437, %v1159, 0.0
        %1161 = vadd.xlane.f32.xlu0 %v1160
        %v1162 = vpop.xlane.xlu0 %1161
        %v1163 = vrcp.pop %v1162
        %v1164 = vmul.f32 %v1159, %v1163
        %1165 = vrot.lane.b32.xlu0 %v356, 80
        %v1166 = vpop.permute.xlu0 %1165
        %v1169 = vsel %vm437, %v1164, 0
        %1171 = vmatprep.subr.mxu0 0.0
        %1172 = vmatpush1.msra.mxu0 %v1166
        %1173 = vmatprep.subr.mxu0 0.0
        %1174 = vmatpush1.msra.mxu0 0.0
        %1175 = vmatprep.subr.mxu0 0.0
        %1176 = vmatpush1.msra.mxu0 0.0
        %1177 = vmatprep.subr.mxu0 0.0
        %1178 = vmatpush1.msra.mxu0 0.0
        %1179 = vmatprep.subr.mxu0 0.0
        %1180 = vmatpush1.msra.mxu0 0.0
        %1181 = vmatprep.subr.mxu0 0.0
        %1182 = vmatpush1.msra.mxu0 0.0
        %1183 = vmatprep.subr.mxu0 0.0
        %1184 = vmatpush1.msra.mxu0 0.0
        %1185 = vmatprep.subr.mxu0 0.0
        %1186 = vmatpush1.msra.mxu0 0.0
        %1187 = vmatprep.subr.mxu0 0.0
        %1188 = vmatpush1.msra.mxu0 0.0
        %1189 = vmatprep.subr.mxu0 0.0
        %1190 = vmatpush1.msra.mxu0 0.0
        %1191 = vmatprep.subr.mxu0 0.0
        %1192 = vmatpush1.msra.mxu0 0.0
        %1193 = vmatprep.subr.mxu0 0.0
        %1194 = vmatpush1.msra.mxu0 0.0
        %1195 = vmatprep.subr.mxu0 0.0
        %1196 = vmatpush1.msra.mxu0 0.0
        %1197 = vmatprep.subr.mxu0 0.0
        %1198 = vmatpush1.msra.mxu0 0.0
        %1199 = vmatprep.subr.mxu0 0.0
        %1200 = vmatpush1.msra.mxu0 0.0
        %1201 = vmatprep.subr.mxu0 0.0
        %1202 = vmatpush1.msra.mxu0 0.0
        %1203 = vmatprep.subr.mxu0 0.0
        %1204 = vmatpush1.msra.mxu0 0.0
        %1205 = vmatprep.subr.mxu0 0.0
        %1206 = vmatpush1.msra.mxu0 0.0
        %1207 = vmatprep.subr.mxu0 0.0
        %1208 = vmatpush1.msra.mxu0 0.0
        %1209 = vmatprep.subr.mxu0 0.0
        %1210 = vmatpush1.msra.mxu0 0.0
        %1211 = vmatprep.subr.mxu0 0.0
        %1212 = vmatpush1.msra.mxu0 0.0
        %1213 = vmatprep.subr.mxu0 0.0
        %1214 = vmatpush1.msra.mxu0 0.0
        %1215 = vmatprep.subr.mxu0 0.0
        %1216 = vmatpush1.msra.mxu0 0.0
        %1217 = vmatprep.subr.mxu0 0.0
        %1218 = vmatpush1.msra.mxu0 0.0
        %1219 = vmatprep.subr.mxu0 0.0
        %1220 = vmatpush1.msra.mxu0 0.0
        %1221 = vmatprep.subr.mxu0 0.0
        %1222 = vmatpush1.msra.mxu0 0.0
        %1223 = vmatprep.subr.mxu0 0.0
        %1224 = vmatpush1.msra.mxu0 0.0
        %1225 = vmatprep.subr.mxu0 0.0
        %1226 = vmatpush1.msra.mxu0 0.0
        %1227 = vmatprep.subr.mxu0 0.0
        %1228 = vmatpush1.msra.mxu0 0.0
        %1229 = vmatprep.subr.mxu0 0.0
        %1230 = vmatpush1.msra.mxu0 0.0
        %1231 = vmatprep.subr.mxu0 0.0
        %1232 = vmatpush1.msra.mxu0 0.0
        %1233 = vmatprep.subr.mxu0 0.0
        %1234 = vmatpush1.msra.mxu0 0.0
        %1235 = vmatprep.mubr.f32.mxu0 0.0
        %1236 = vmatmul.mubr.f32.gmra.mrb[0].mxu0 %v1169
        %v1237 = vpop.f32.mrb[0].mxu0
        %v1238 = vadd.f32 0.0, %v1237
        %v1239 = vpop.f32.mrb[0].mxu0
        %1240 = vdwg.mxu0
        %v1242 = vsel %vm359, %v1238, 0
        %1244 = vmatprep.subr.mxu0 0.0
        %1245 = vmatpush1.msra.mxu0 %v275
        %1246 = vmatprep.subr.mxu0 0.0
        %1247 = vmatpush1.msra.mxu0 %v276
        %1248 = vmatprep.subr.mxu0 0.0
        %1249 = vmatpush1.msra.mxu0 0.0
        %1250 = vmatprep.subr.mxu0 0.0
        %1251 = vmatpush1.msra.mxu0 0.0
        %1252 = vmatprep.subr.mxu0 0.0
        %1253 = vmatpush1.msra.mxu0 0.0
        %1254 = vmatprep.subr.mxu0 0.0
        %1255 = vmatpush1.msra.mxu0 0.0
        %1256 = vmatprep.subr.mxu0 0.0
        %1257 = vmatpush1.msra.mxu0 0.0
        %1258 = vmatprep.subr.mxu0 0.0
        %1259 = vmatpush1.msra.mxu0 0.0
        %1260 = vmatprep.subr.mxu0 0.0
        %1261 = vmatpush1.msra.mxu0 0.0
        %1262 = vmatprep.subr.mxu0 0.0
        %1263 = vmatpush1.msra.mxu0 0.0
        %1264 = vmatprep.subr.mxu0 0.0
        %1265 = vmatpush1.msra.mxu0 0.0
        %1266 = vmatprep.subr.mxu0 0.0
        %1267 = vmatpush1.msra.mxu0 0.0
        %1268 = vmatprep.subr.mxu0 0.0
        %1269 = vmatpush1.msra.mxu0 0.0
        %1270 = vmatprep.subr.mxu0 0.0
        %1271 = vmatpush1.msra.mxu0 0.0
        %1272 = vmatprep.subr.mxu0 0.0
        %1273 = vmatpush1.msra.mxu0 0.0
        %1274 = vmatprep.subr.mxu0 0.0
        %1275 = vmatpush1.msra.mxu0 0.0
        %1276 = vmatprep.subr.mxu0 0.0
        %1277 = vmatpush1.msra.mxu0 0.0
        %1278 = vmatprep.subr.mxu0 0.0
        %1279 = vmatpush1.msra.mxu0 0.0
        %1280 = vmatprep.subr.mxu0 0.0
        %1281 = vmatpush1.msra.mxu0 0.0
        %1282 = vmatprep.subr.mxu0 0.0
        %1283 = vmatpush1.msra.mxu0 0.0
        %1284 = vmatprep.subr.mxu0 0.0
        %1285 = vmatpush1.msra.mxu0 0.0
        %1286 = vmatprep.subr.mxu0 0.0
        %1287 = vmatpush1.msra.mxu0 0.0
        %1288 = vmatprep.subr.mxu0 0.0
        %1289 = vmatpush1.msra.mxu0 0.0
        %1290 = vmatprep.subr.mxu0 0.0
        %1291 = vmatpush1.msra.mxu0 0.0
        %1292 = vmatprep.subr.mxu0 0.0
        %1293 = vmatpush1.msra.mxu0 0.0
        %1294 = vmatprep.subr.mxu0 0.0
        %1295 = vmatpush1.msra.mxu0 0.0
        %1296 = vmatprep.subr.mxu0 0.0
        %1297 = vmatpush1.msra.mxu0 0.0
        %1298 = vmatprep.subr.mxu0 0.0
        %1299 = vmatpush1.msra.mxu0 0.0
        %1300 = vmatprep.subr.mxu0 0.0
        %1301 = vmatpush1.msra.mxu0 0.0
        %1302 = vmatprep.subr.mxu0 0.0
        %1303 = vmatpush1.msra.mxu0 0.0
        %1304 = vmatprep.subr.mxu0 0.0
        %1305 = vmatpush1.msra.mxu0 0.0
        %1306 = vmatprep.subr.mxu0 0.0
        %1307 = vmatpush1.msra.mxu0 0.0
        %1308 = vmatprep.mubr.f32.mxu0 0.0
        %1309 = vmatmul.mubr.f32.gmra.mrb[0].mxu0 %v1242
        %v1310 = vpop.f32.mrb[0].mxu0
        %v1311 = vadd.f32 0.0, %v1310
        %v1312 = vpop.f32.mrb[0].mxu0
        %1313 = vdwg.mxu0
        %v1314 = vadd.f32 %v1074, %v1311
        %1315 = vrot.lane.b32.xlu0 %v358, 64
        %v1316 = vpop.permute.xlu0 %1315
        %1317 = vrot.lane.b32.xlu0 %v354, 64
        %v1318 = vpop.permute.xlu0 %1317
        %v1319 = vsel %vm359, %v1316, 0
        %v1321 = vsel %vm359, %v1318, 0
        %1323 = vmatprep.subr.mxu0 0.0
        %1324 = vmatpush1.xpose.msra.mxu0 %v1321
        %1325 = vmatprep.subr.mxu0 0.0
        %1326 = vmatpush1.xpose.msra.mxu0 0.0
        %1327 = vmatprep.subr.mxu0 0.0
        %1328 = vmatpush1.xpose.msra.mxu0 0.0
        %1329 = vmatprep.subr.mxu0 0.0
        %1330 = vmatpush1.xpose.msra.mxu0 0.0
        %1331 = vmatprep.subr.mxu0 0.0
        %1332 = vmatpush1.xpose.msra.mxu0 0.0
        %1333 = vmatprep.subr.mxu0 0.0
        %1334 = vmatpush1.xpose.msra.mxu0 0.0
        %1335 = vmatprep.subr.mxu0 0.0
        %1336 = vmatpush1.xpose.msra.mxu0 0.0
        %1337 = vmatprep.subr.mxu0 0.0
        %1338 = vmatpush1.xpose.msra.mxu0 0.0
        %1339 = vmatprep.subr.mxu0 0.0
        %1340 = vmatpush1.xpose.msra.mxu0 0.0
        %1341 = vmatprep.subr.mxu0 0.0
        %1342 = vmatpush1.xpose.msra.mxu0 0.0
        %1343 = vmatprep.subr.mxu0 0.0
        %1344 = vmatpush1.xpose.msra.mxu0 0.0
        %1345 = vmatprep.subr.mxu0 0.0
        %1346 = vmatpush1.xpose.msra.mxu0 0.0
        %1347 = vmatprep.subr.mxu0 0.0
        %1348 = vmatpush1.xpose.msra.mxu0 0.0
        %1349 = vmatprep.subr.mxu0 0.0
        %1350 = vmatpush1.xpose.msra.mxu0 0.0
        %1351 = vmatprep.subr.mxu0 0.0
        %1352 = vmatpush1.xpose.msra.mxu0 0.0
        %1353 = vmatprep.subr.mxu0 0.0
        %1354 = vmatpush1.xpose.msra.mxu0 0.0
        %1355 = vmatprep.subr.mxu0 0.0
        %1356 = vmatpush1.xpose.msra.mxu0 0.0
        %1357 = vmatprep.subr.mxu0 0.0
        %1358 = vmatpush1.xpose.msra.mxu0 0.0
        %1359 = vmatprep.subr.mxu0 0.0
        %1360 = vmatpush1.xpose.msra.mxu0 0.0
        %1361 = vmatprep.subr.mxu0 0.0
        %1362 = vmatpush1.xpose.msra.mxu0 0.0
        %1363 = vmatprep.subr.mxu0 0.0
        %1364 = vmatpush1.xpose.msra.mxu0 0.0
        %1365 = vmatprep.subr.mxu0 0.0
        %1366 = vmatpush1.xpose.msra.mxu0 0.0
        %1367 = vmatprep.subr.mxu0 0.0
        %1368 = vmatpush1.xpose.msra.mxu0 0.0
        %1369 = vmatprep.subr.mxu0 0.0
        %1370 = vmatpush1.xpose.msra.mxu0 0.0
        %1371 = vmatprep.subr.mxu0 0.0
        %1372 = vmatpush1.xpose.msra.mxu0 0.0
        %1373 = vmatprep.subr.mxu0 0.0
        %1374 = vmatpush1.xpose.msra.mxu0 0.0
        %1375 = vmatprep.subr.mxu0 0.0
        %1376 = vmatpush1.xpose.msra.mxu0 0.0
        %1377 = vmatprep.subr.mxu0 0.0
        %1378 = vmatpush1.xpose.msra.mxu0 0.0
        %1379 = vmatprep.subr.mxu0 0.0
        %1380 = vmatpush1.xpose.msra.mxu0 0.0
        %1381 = vmatprep.subr.mxu0 0.0
        %1382 = vmatpush1.xpose.msra.mxu0 0.0
        %1383 = vmatprep.subr.mxu0 0.0
        %1384 = vmatpush1.xpose.msra.mxu0 0.0
        %1385 = vmatprep.subr.mxu0 0.0
        %1386 = vmatpush1.xpose.msra.mxu0 0.0
        %1387 = vmatprep.mubr.f32.mxu0 0.0
        %1388 = vmatmul.mubr.f32.gmra.mrb[0].mxu0 %v1319
        %v1389 = vpop.f32.mrb[0].mxu0
        %v1390 = vadd.f32 0.0, %v1389
        %v1391 = vpop.f32.mrb[0].mxu0
        %1392 = vdwg.mxu0
        %v1393 = vmul.f32 %v1390, 0.088388346
        %v1394 = vsel %vm437, %v1393, -inf
        %1395 = vmax.xlane.f32.xlu0 %v1394
        %v1396 = vpop.xlane.xlu0 %1395
        %v1397 = vsub.f32 %v1393, %v1396
        %v1398 = vmul.f32 %v1397, 1.442695
        %v1399 = vpow.pop %v1398
        %v1400 = vsel %vm437, %v1399, 0.0
        %1401 = vadd.xlane.f32.xlu0 %v1400
        %v1402 = vpop.xlane.xlu0 %1401
        %v1403 = vrcp.pop %v1402
        %v1404 = vmul.f32 %v1399, %v1403
        %1405 = vrot.lane.b32.xlu0 %v356, 64
        %v1406 = vpop.permute.xlu0 %1405
        %v1409 = vsel %vm437, %v1404, 0
        %1411 = vmatprep.subr.mxu0 0.0
        %1412 = vmatpush1.msra.mxu0 %v1406
        %1413 = vmatprep.subr.mxu0 0.0
        %1414 = vmatpush1.msra.mxu0 0.0
        %1415 = vmatprep.subr.mxu0 0.0
        %1416 = vmatpush1.msra.mxu0 0.0
        %1417 = vmatprep.subr.mxu0 0.0
        %1418 = vmatpush1.msra.mxu0 0.0
        %1419 = vmatprep.subr.mxu0 0.0
        %1420 = vmatpush1.msra.mxu0 0.0
        %1421 = vmatprep.subr.mxu0 0.0
        %1422 = vmatpush1.msra.mxu0 0.0
        %1423 = vmatprep.subr.mxu0 0.0
        %1424 = vmatpush1.msra.mxu0 0.0
        %1425 = vmatprep.subr.mxu0 0.0
        %1426 = vmatpush1.msra.mxu0 0.0
        %1427 = vmatprep.subr.mxu0 0.0
        %1428 = vmatpush1.msra.mxu0 0.0
        %1429 = vmatprep.subr.mxu0 0.0
        %1430 = vmatpush1.msra.mxu0 0.0
        %1431 = vmatprep.subr.mxu0 0.0
        %1432 = vmatpush1.msra.mxu0 0.0
        %1433 = vmatprep.subr.mxu0 0.0
        %1434 = vmatpush1.msra.mxu0 0.0
        %1435 = vmatprep.subr.mxu0 0.0
        %1436 = vmatpush1.msra.mxu0 0.0
        %1437 = vmatprep.subr.mxu0 0.0
        %1438 = vmatpush1.msra.mxu0 0.0
        %1439 = vmatprep.subr.mxu0 0.0
        %1440 = vmatpush1.msra.mxu0 0.0
        %1441 = vmatprep.subr.mxu0 0.0
        %1442 = vmatpush1.msra.mxu0 0.0
        %1443 = vmatprep.subr.mxu0 0.0
        %1444 = vmatpush1.msra.mxu0 0.0
        %1445 = vmatprep.subr.mxu0 0.0
        %1446 = vmatpush1.msra.mxu0 0.0
        %1447 = vmatprep.subr.mxu0 0.0
        %1448 = vmatpush1.msra.mxu0 0.0
        %1449 = vmatprep.subr.mxu0 0.0
        %1450 = vmatpush1.msra.mxu0 0.0
        %1451 = vmatprep.subr.mxu0 0.0
        %1452 = vmatpush1.msra.mxu0 0.0
        %1453 = vmatprep.subr.mxu0 0.0
        %1454 = vmatpush1.msra.mxu0 0.0
        %1455 = vmatprep.subr.mxu0 0.0
        %1456 = vmatpush1.msra.mxu0 0.0
        %1457 = vmatprep.subr.mxu0 0.0
        %1458 = vmatpush1.msra.mxu0 0.0
        %1459 = vmatprep.subr.mxu0 0.0
        %1460 = vmatpush1.msra.mxu0 0.0
        %1461 = vmatprep.subr.mxu0 0.0
        %1462 = vmatpush1.msra.mxu0 0.0
        %1463 = vmatprep.subr.mxu0 0.0
        %1464 = vmatpush1.msra.mxu0 0.0
        %1465 = vmatprep.subr.mxu0 0.0
        %1466 = vmatpush1.msra.mxu0 0.0
        %1467 = vmatprep.subr.mxu0 0.0
        %1468 = vmatpush1.msra.mxu0 0.0
        %1469 = vmatprep.subr.mxu0 0.0
        %1470 = vmatpush1.msra.mxu0 0.0
        %1471 = vmatprep.subr.mxu0 0.0
        %1472 = vmatpush1.msra.mxu0 0.0
        %1473 = vmatprep.subr.mxu0 0.0
        %1474 = vmatpush1.msra.mxu0 0.0
        %1475 = vmatprep.mubr.f32.mxu0 0.0
        %1476 = vmatmul.mubr.f32.gmra.mrb[0].mxu0 %v1409
        %v1477 = vpop.f32.mrb[0].mxu0
        %v1478 = vadd.f32 0.0, %v1477
        %v1479 = vpop.f32.mrb[0].mxu0
        %1480 = vdwg.mxu0
        %v1482 = vsel %vm359, %v1478, 0
        %1484 = vmatprep.subr.mxu0 0.0
        %1485 = vmatpush1.msra.mxu0 %v277
        %1486 = vmatprep.subr.mxu0 0.0
        %1487 = vmatpush1.msra.mxu0 %v278
        %1488 = vmatprep.subr.mxu0 0.0
        %1489 = vmatpush1.msra.mxu0 0.0
        %1490 = vmatprep.subr.mxu0 0.0
        %1491 = vmatpush1.msra.mxu0 0.0
        %1492 = vmatprep.subr.mxu0 0.0
        %1493 = vmatpush1.msra.mxu0 0.0
        %1494 = vmatprep.subr.mxu0 0.0
        %1495 = vmatpush1.msra.mxu0 0.0
        %1496 = vmatprep.subr.mxu0 0.0
        %1497 = vmatpush1.msra.mxu0 0.0
        %1498 = vmatprep.subr.mxu0 0.0
        %1499 = vmatpush1.msra.mxu0 0.0
        %1500 = vmatprep.subr.mxu0 0.0
        %1501 = vmatpush1.msra.mxu0 0.0
        %1502 = vmatprep.subr.mxu0 0.0
        %1503 = vmatpush1.msra.mxu0 0.0
        %1504 = vmatprep.subr.mxu0 0.0
        %1505 = vmatpush1.msra.mxu0 0.0
        %1506 = vmatprep.subr.mxu0 0.0
        %1507 = vmatpush1.msra.mxu0 0.0
        %1508 = vmatprep.subr.mxu0 0.0
        %1509 = vmatpush1.msra.mxu0 0.0
        %1510 = vmatprep.subr.mxu0 0.0
        %1511 = vmatpush1.msra.mxu0 0.0
        %1512 = vmatprep.subr.mxu0 0.0
        %1513 = vmatpush1.msra.mxu0 0.0
        %1514 = vmatprep.subr.mxu0 0.0
        %1515 = vmatpush1.msra.mxu0 0.0
        %1516 = vmatprep.subr.mxu0 0.0
        %1517 = vmatpush1.msra.mxu0 0.0
        %1518 = vmatprep.subr.mxu0 0.0
        %1519 = vmatpush1.msra.mxu0 0.0
        %1520 = vmatprep.subr.mxu0 0.0
        %1521 = vmatpush1.msra.mxu0 0.0
        %1522 = vmatprep.subr.mxu0 0.0
        %1523 = vmatpush1.msra.mxu0 0.0
        %1524 = vmatprep.subr.mxu0 0.0
        %1525 = vmatpush1.msra.mxu0 0.0
        %1526 = vmatprep.subr.mxu0 0.0
        %1527 = vmatpush1.msra.mxu0 0.0
        %1528 = vmatprep.subr.mxu0 0.0
        %1529 = vmatpush1.msra.mxu0 0.0
        %1530 = vmatprep.subr.mxu0 0.0
        %1531 = vmatpush1.msra.mxu0 0.0
        %1532 = vmatprep.subr.mxu0 0.0
        %1533 = vmatpush1.msra.mxu0 0.0
        %1534 = vmatprep.subr.mxu0 0.0
        %1535 = vmatpush1.msra.mxu0 0.0
        %1536 = vmatprep.subr.mxu0 0.0
        %1537 = vmatpush1.msra.mxu0 0.0
        %1538 = vmatprep.subr.mxu0 0.0
        %1539 = vmatpush1.msra.mxu0 0.0
        %1540 = vmatprep.subr.mxu0 0.0
        %1541 = vmatpush1.msra.mxu0 0.0
        %1542 = vmatprep.subr.mxu0 0.0
        %1543 = vmatpush1.msra.mxu0 0.0
        %1544 = vmatprep.subr.mxu0 0.0
        %1545 = vmatpush1.msra.mxu0 0.0
        %1546 = vmatprep.subr.mxu0 0.0
        %1547 = vmatpush1.msra.mxu0 0.0
        %1548 = vmatprep.mubr.f32.mxu0 0.0
        %1549 = vmatmul.mubr.f32.gmra.mrb[0].mxu0 %v1482
        %v1550 = vpop.f32.mrb[0].mxu0
        %v1551 = vadd.f32 0.0, %v1550
        %v1552 = vpop.f32.mrb[0].mxu0
        %1553 = vdwg.mxu0
        %v1554 = vadd.f32 %v1314, %v1551
        %1555 = vrot.lane.b32.xlu0 %v358, 48
        %v1556 = vpop.permute.xlu0 %1555
        %1557 = vrot.lane.b32.xlu0 %v354, 48
        %v1558 = vpop.permute.xlu0 %1557
        %v1559 = vsel %vm359, %v1556, 0
        %v1561 = vsel %vm359, %v1558, 0
        %1563 = vmatprep.subr.mxu0 0.0
        %1564 = vmatpush1.xpose.msra.mxu0 %v1561
        %1565 = vmatprep.subr.mxu0 0.0
        %1566 = vmatpush1.xpose.msra.mxu0 0.0
        %1567 = vmatprep.subr.mxu0 0.0
        %1568 = vmatpush1.xpose.msra.mxu0 0.0
        %1569 = vmatprep.subr.mxu0 0.0
        %1570 = vmatpush1.xpose.msra.mxu0 0.0
        %1571 = vmatprep.subr.mxu0 0.0
        %1572 = vmatpush1.xpose.msra.mxu0 0.0
        %1573 = vmatprep.subr.mxu0 0.0
        %1574 = vmatpush1.xpose.msra.mxu0 0.0
        %1575 = vmatprep.subr.mxu0 0.0
        %1576 = vmatpush1.xpose.msra.mxu0 0.0
        %1577 = vmatprep.subr.mxu0 0.0
        %1578 = vmatpush1.xpose.msra.mxu0 0.0
        %1579 = vmatprep.subr.mxu0 0.0
        %1580 = vmatpush1.xpose.msra.mxu0 0.0
        %1581 = vmatprep.subr.mxu0 0.0
        %1582 = vmatpush1.xpose.msra.mxu0 0.0
        %1583 = vmatprep.subr.mxu0 0.0
        %1584 = vmatpush1.xpose.msra.mxu0 0.0
        %1585 = vmatprep.subr.mxu0 0.0
        %1586 = vmatpush1.xpose.msra.mxu0 0.0
        %1587 = vmatprep.subr.mxu0 0.0
        %1588 = vmatpush1.xpose.msra.mxu0 0.0
        %1589 = vmatprep.subr.mxu0 0.0
        %1590 = vmatpush1.xpose.msra.mxu0 0.0
        %1591 = vmatprep.subr.mxu0 0.0
        %1592 = vmatpush1.xpose.msra.mxu0 0.0
        %1593 = vmatprep.subr.mxu0 0.0
        %1594 = vmatpush1.xpose.msra.mxu0 0.0
        %1595 = vmatprep.subr.mxu0 0.0
        %1596 = vmatpush1.xpose.msra.mxu0 0.0
        %1597 = vmatprep.subr.mxu0 0.0
        %1598 = vmatpush1.xpose.msra.mxu0 0.0
        %1599 = vmatprep.subr.mxu0 0.0
        %1600 = vmatpush1.xpose.msra.mxu0 0.0
        %1601 = vmatprep.subr.mxu0 0.0
        %1602 = vmatpush1.xpose.msra.mxu0 0.0
        %1603 = vmatprep.subr.mxu0 0.0
        %1604 = vmatpush1.xpose.msra.mxu0 0.0
        %1605 = vmatprep.subr.mxu0 0.0
        %1606 = vmatpush1.xpose.msra.mxu0 0.0
        %1607 = vmatprep.subr.mxu0 0.0
        %1608 = vmatpush1.xpose.msra.mxu0 0.0
        %1609 = vmatprep.subr.mxu0 0.0
        %1610 = vmatpush1.xpose.msra.mxu0 0.0
        %1611 = vmatprep.subr.mxu0 0.0
        %1612 = vmatpush1.xpose.msra.mxu0 0.0
        %1613 = vmatprep.subr.mxu0 0.0
        %1614 = vmatpush1.xpose.msra.mxu0 0.0
        %1615 = vmatprep.subr.mxu0 0.0
        %1616 = vmatpush1.xpose.msra.mxu0 0.0
        %1617 = vmatprep.subr.mxu0 0.0
        %1618 = vmatpush1.xpose.msra.mxu0 0.0
        %1619 = vmatprep.subr.mxu0 0.0
        %1620 = vmatpush1.xpose.msra.mxu0 0.0
        %1621 = vmatprep.subr.mxu0 0.0
        %1622 = vmatpush1.xpose.msra.mxu0 0.0
        %1623 = vmatprep.subr.mxu0 0.0
        %1624 = vmatpush1.xpose.msra.mxu0 0.0
        %1625 = vmatprep.subr.mxu0 0.0
        %1626 = vmatpush1.xpose.msra.mxu0 0.0
        %1627 = vmatprep.mubr.f32.mxu0 0.0
        %1628 = vmatmul.mubr.f32.gmra.mrb[0].mxu0 %v1559
        %v1629 = vpop.f32.mrb[0].mxu0
        %v1630 = vadd.f32 0.0, %v1629
        %v1631 = vpop.f32.mrb[0].mxu0
        %1632 = vdwg.mxu0
        %v1633 = vmul.f32 %v1630, 0.088388346
        %v1634 = vsel %vm437, %v1633, -inf
        %1635 = vmax.xlane.f32.xlu0 %v1634
        %v1636 = vpop.xlane.xlu0 %1635
        %v1637 = vsub.f32 %v1633, %v1636
        %v1638 = vmul.f32 %v1637, 1.442695
        %v1639 = vpow.pop %v1638
        %v1640 = vsel %vm437, %v1639, 0.0
        %1641 = vadd.xlane.f32.xlu0 %v1640
        %v1642 = vpop.xlane.xlu0 %1641
        %v1643 = vrcp.pop %v1642
        %v1644 = vmul.f32 %v1639, %v1643
        %1645 = vrot.lane.b32.xlu0 %v356, 48
        %v1646 = vpop.permute.xlu0 %1645
        %v1649 = vsel %vm437, %v1644, 0
        %1651 = vmatprep.subr.mxu0 0.0
        %1652 = vmatpush1.msra.mxu0 %v1646
        %1653 = vmatprep.subr.mxu0 0.0
        %1654 = vmatpush1.msra.mxu0 0.0
        %1655 = vmatprep.subr.mxu0 0.0
        %1656 = vmatpush1.msra.mxu0 0.0
        %1657 = vmatprep.subr.mxu0 0.0
        %1658 = vmatpush1.msra.mxu0 0.0
        %1659 = vmatprep.subr.mxu0 0.0
        %1660 = vmatpush1.msra.mxu0 0.0
        %1661 = vmatprep.subr.mxu0 0.0
        %1662 = vmatpush1.msra.mxu0 0.0
        %1663 = vmatprep.subr.mxu0 0.0
        %1664 = vmatpush1.msra.mxu0 0.0
        %1665 = vmatprep.subr.mxu0 0.0
        %1666 = vmatpush1.msra.mxu0 0.0
        %1667 = vmatprep.subr.mxu0 0.0
        %1668 = vmatpush1.msra.mxu0 0.0
        %1669 = vmatprep.subr.mxu0 0.0
        %1670 = vmatpush1.msra.mxu0 0.0
        %1671 = vmatprep.subr.mxu0 0.0
        %1672 = vmatpush1.msra.mxu0 0.0
        %1673 = vmatprep.subr.mxu0 0.0
        %1674 = vmatpush1.msra.mxu0 0.0
        %1675 = vmatprep.subr.mxu0 0.0
        %1676 = vmatpush1.msra.mxu0 0.0
        %1677 = vmatprep.subr.mxu0 0.0
        %1678 = vmatpush1.msra.mxu0 0.0
        %1679 = vmatprep.subr.mxu0 0.0
        %1680 = vmatpush1.msra.mxu0 0.0
        %1681 = vmatprep.subr.mxu0 0.0
        %1682 = vmatpush1.msra.mxu0 0.0
        %1683 = vmatprep.subr.mxu0 0.0
        %1684 = vmatpush1.msra.mxu0 0.0
        %1685 = vmatprep.subr.mxu0 0.0
        %1686 = vmatpush1.msra.mxu0 0.0
        %1687 = vmatprep.subr.mxu0 0.0
        %1688 = vmatpush1.msra.mxu0 0.0
        %1689 = vmatprep.subr.mxu0 0.0
        %1690 = vmatpush1.msra.mxu0 0.0
        %1691 = vmatprep.subr.mxu0 0.0
        %1692 = vmatpush1.msra.mxu0 0.0
        %1693 = vmatprep.subr.mxu0 0.0
        %1694 = vmatpush1.msra.mxu0 0.0
        %1695 = vmatprep.subr.mxu0 0.0
        %1696 = vmatpush1.msra.mxu0 0.0
        %1697 = vmatprep.subr.mxu0 0.0
        %1698 = vmatpush1.msra.mxu0 0.0
        %1699 = vmatprep.subr.mxu0 0.0
        %1700 = vmatpush1.msra.mxu0 0.0
        %1701 = vmatprep.subr.mxu0 0.0
        %1702 = vmatpush1.msra.mxu0 0.0
        %1703 = vmatprep.subr.mxu0 0.0
        %1704 = vmatpush1.msra.mxu0 0.0
        %1705 = vmatprep.subr.mxu0 0.0
        %1706 = vmatpush1.msra.mxu0 0.0
        %1707 = vmatprep.subr.mxu0 0.0
        %1708 = vmatpush1.msra.mxu0 0.0
        %1709 = vmatprep.subr.mxu0 0.0
        %1710 = vmatpush1.msra.mxu0 0.0
        %1711 = vmatprep.subr.mxu0 0.0
        %1712 = vmatpush1.msra.mxu0 0.0
        %1713 = vmatprep.subr.mxu0 0.0
        %1714 = vmatpush1.msra.mxu0 0.0
        %1715 = vmatprep.mubr.f32.mxu0 0.0
        %1716 = vmatmul.mubr.f32.gmra.mrb[0].mxu0 %v1649
        %v1717 = vpop.f32.mrb[0].mxu0
        %v1718 = vadd.f32 0.0, %v1717
        %v1719 = vpop.f32.mrb[0].mxu0
        %1720 = vdwg.mxu0
        %v1722 = vsel %vm359, %v1718, 0
        %1724 = vmatprep.subr.mxu0 0.0
        %1725 = vmatpush1.msra.mxu0 %v279
        %1726 = vmatprep.subr.mxu0 0.0
        %1727 = vmatpush1.msra.mxu0 %v280
        %1728 = vmatprep.subr.mxu0 0.0
        %1729 = vmatpush1.msra.mxu0 0.0
        %1730 = vmatprep.subr.mxu0 0.0
        %1731 = vmatpush1.msra.mxu0 0.0
        %1732 = vmatprep.subr.mxu0 0.0
        %1733 = vmatpush1.msra.mxu0 0.0
        %1734 = vmatprep.subr.mxu0 0.0
        %1735 = vmatpush1.msra.mxu0 0.0
        %1736 = vmatprep.subr.mxu0 0.0
        %1737 = vmatpush1.msra.mxu0 0.0
        %1738 = vmatprep.subr.mxu0 0.0
        %1739 = vmatpush1.msra.mxu0 0.0
        %1740 = vmatprep.subr.mxu0 0.0
        %1741 = vmatpush1.msra.mxu0 0.0
        %1742 = vmatprep.subr.mxu0 0.0
        %1743 = vmatpush1.msra.mxu0 0.0
        %1744 = vmatprep.subr.mxu0 0.0
        %1745 = vmatpush1.msra.mxu0 0.0
        %1746 = vmatprep.subr.mxu0 0.0
        %1747 = vmatpush1.msra.mxu0 0.0
        %1748 = vmatprep.subr.mxu0 0.0
        %1749 = vmatpush1.msra.mxu0 0.0
        %1750 = vmatprep.subr.mxu0 0.0
        %1751 = vmatpush1.msra.mxu0 0.0
        %1752 = vmatprep.subr.mxu0 0.0
        %1753 = vmatpush1.msra.mxu0 0.0
        %1754 = vmatprep.subr.mxu0 0.0
        %1755 = vmatpush1.msra.mxu0 0.0
        %1756 = vmatprep.subr.mxu0 0.0
        %1757 = vmatpush1.msra.mxu0 0.0
        %1758 = vmatprep.subr.mxu0 0.0
        %1759 = vmatpush1.msra.mxu0 0.0
        %1760 = vmatprep.subr.mxu0 0.0
        %1761 = vmatpush1.msra.mxu0 0.0
        %1762 = vmatprep.subr.mxu0 0.0
        %1763 = vmatpush1.msra.mxu0 0.0
        %1764 = vmatprep.subr.mxu0 0.0
        %1765 = vmatpush1.msra.mxu0 0.0
        %1766 = vmatprep.subr.mxu0 0.0
        %1767 = vmatpush1.msra.mxu0 0.0
        %1768 = vmatprep.subr.mxu0 0.0
        %1769 = vmatpush1.msra.mxu0 0.0
        %1770 = vmatprep.subr.mxu0 0.0
        %1771 = vmatpush1.msra.mxu0 0.0
        %1772 = vmatprep.subr.mxu0 0.0
        %1773 = vmatpush1.msra.mxu0 0.0
        %1774 = vmatprep.subr.mxu0 0.0
        %1775 = vmatpush1.msra.mxu0 0.0
        %1776 = vmatprep.subr.mxu0 0.0
        %1777 = vmatpush1.msra.mxu0 0.0
        %1778 = vmatprep.subr.mxu0 0.0
        %1779 = vmatpush1.msra.mxu0 0.0
        %1780 = vmatprep.subr.mxu0 0.0
        %1781 = vmatpush1.msra.mxu0 0.0
        %1782 = vmatprep.subr.mxu0 0.0
        %1783 = vmatpush1.msra.mxu0 0.0
        %1784 = vmatprep.subr.mxu0 0.0
        %1785 = vmatpush1.msra.mxu0 0.0
        %1786 = vmatprep.subr.mxu0 0.0
        %1787 = vmatpush1.msra.mxu0 0.0
        %1788 = vmatprep.mubr.f32.mxu0 0.0
        %1789 = vmatmul.mubr.f32.gmra.mrb[0].mxu0 %v1722
        %v1790 = vpop.f32.mrb[0].mxu0
        %v1791 = vadd.f32 0.0, %v1790
        %v1792 = vpop.f32.mrb[0].mxu0
        %1793 = vdwg.mxu0
        %v1794 = vadd.f32 %v1554, %v1791
        %1795 = vrot.lane.b32.xlu0 %v358, 32
        %v1796 = vpop.permute.xlu0 %1795
        %1797 = vrot.lane.b32.xlu0 %v354, 32
        %v1798 = vpop.permute.xlu0 %1797
        %v1799 = vsel %vm359, %v1796, 0
        %v1801 = vsel %vm359, %v1798, 0
        %1803 = vmatprep.subr.mxu0 0.0
        %1804 = vmatpush1.xpose.msra.mxu0 %v1801
        %1805 = vmatprep.subr.mxu0 0.0
        %1806 = vmatpush1.xpose.msra.mxu0 0.0
        %1807 = vmatprep.subr.mxu0 0.0
        %1808 = vmatpush1.xpose.msra.mxu0 0.0
        %1809 = vmatprep.subr.mxu0 0.0
        %1810 = vmatpush1.xpose.msra.mxu0 0.0
        %1811 = vmatprep.subr.mxu0 0.0
        %1812 = vmatpush1.xpose.msra.mxu0 0.0
        %1813 = vmatprep.subr.mxu0 0.0
        %1814 = vmatpush1.xpose.msra.mxu0 0.0
        %1815 = vmatprep.subr.mxu0 0.0
        %1816 = vmatpush1.xpose.msra.mxu0 0.0
        %1817 = vmatprep.subr.mxu0 0.0
        %1818 = vmatpush1.xpose.msra.mxu0 0.0
        %1819 = vmatprep.subr.mxu0 0.0
        %1820 = vmatpush1.xpose.msra.mxu0 0.0
        %1821 = vmatprep.subr.mxu0 0.0
        %1822 = vmatpush1.xpose.msra.mxu0 0.0
        %1823 = vmatprep.subr.mxu0 0.0
        %1824 = vmatpush1.xpose.msra.mxu0 0.0
        %1825 = vmatprep.subr.mxu0 0.0
        %1826 = vmatpush1.xpose.msra.mxu0 0.0
        %1827 = vmatprep.subr.mxu0 0.0
        %1828 = vmatpush1.xpose.msra.mxu0 0.0
        %1829 = vmatprep.subr.mxu0 0.0
        %1830 = vmatpush1.xpose.msra.mxu0 0.0
        %1831 = vmatprep.subr.mxu0 0.0
        %1832 = vmatpush1.xpose.msra.mxu0 0.0
        %1833 = vmatprep.subr.mxu0 0.0
        %1834 = vmatpush1.xpose.msra.mxu0 0.0
        %1835 = vmatprep.subr.mxu0 0.0
        %1836 = vmatpush1.xpose.msra.mxu0 0.0
        %1837 = vmatprep.subr.mxu0 0.0
        %1838 = vmatpush1.xpose.msra.mxu0 0.0
        %1839 = vmatprep.subr.mxu0 0.0
        %1840 = vmatpush1.xpose.msra.mxu0 0.0
        %1841 = vmatprep.subr.mxu0 0.0
        %1842 = vmatpush1.xpose.msra.mxu0 0.0
        %1843 = vmatprep.subr.mxu0 0.0
        %1844 = vmatpush1.xpose.msra.mxu0 0.0
        %1845 = vmatprep.subr.mxu0 0.0
        %1846 = vmatpush1.xpose.msra.mxu0 0.0
        %1847 = vmatprep.subr.mxu0 0.0
        %1848 = vmatpush1.xpose.msra.mxu0 0.0
        %1849 = vmatprep.subr.mxu0 0.0
        %1850 = vmatpush1.xpose.msra.mxu0 0.0
        %1851 = vmatprep.subr.mxu0 0.0
        %1852 = vmatpush1.xpose.msra.mxu0 0.0
        %1853 = vmatprep.subr.mxu0 0.0
        %1854 = vmatpush1.xpose.msra.mxu0 0.0
        %1855 = vmatprep.subr.mxu0 0.0
        %1856 = vmatpush1.xpose.msra.mxu0 0.0
        %1857 = vmatprep.subr.mxu0 0.0
        %1858 = vmatpush1.xpose.msra.mxu0 0.0
        %1859 = vmatprep.subr.mxu0 0.0
        %1860 = vmatpush1.xpose.msra.mxu0 0.0
        %1861 = vmatprep.subr.mxu0 0.0
        %1862 = vmatpush1.xpose.msra.mxu0 0.0
        %1863 = vmatprep.subr.mxu0 0.0
        %1864 = vmatpush1.xpose.msra.mxu0 0.0
        %1865 = vmatprep.subr.mxu0 0.0
        %1866 = vmatpush1.xpose.msra.mxu0 0.0
        %1867 = vmatprep.mubr.f32.mxu0 0.0
        %1868 = vmatmul.mubr.f32.gmra.mrb[0].mxu0 %v1799
        %v1869 = vpop.f32.mrb[0].mxu0
        %v1870 = vadd.f32 0.0, %v1869
        %v1871 = vpop.f32.mrb[0].mxu0
        %1872 = vdwg.mxu0
        %v1873 = vmul.f32 %v1870, 0.088388346
        %v1874 = vsel %vm437, %v1873, -inf
        %1875 = vmax.xlane.f32.xlu0 %v1874
        %v1876 = vpop.xlane.xlu0 %1875
        %v1877 = vsub.f32 %v1873, %v1876
        %v1878 = vmul.f32 %v1877, 1.442695
        %v1879 = vpow.pop %v1878
        %v1880 = vsel %vm437, %v1879, 0.0
        %1881 = vadd.xlane.f32.xlu0 %v1880
        %v1882 = vpop.xlane.xlu0 %1881
        %v1883 = vrcp.pop %v1882
        %v1884 = vmul.f32 %v1879, %v1883
        %1885 = vrot.lane.b32.xlu0 %v356, 32
        %v1886 = vpop.permute.xlu0 %1885
        %v1889 = vsel %vm437, %v1884, 0
        %1891 = vmatprep.subr.mxu0 0.0
        %1892 = vmatpush1.msra.mxu0 %v1886
        %1893 = vmatprep.subr.mxu0 0.0
        %1894 = vmatpush1.msra.mxu0 0.0
        %1895 = vmatprep.subr.mxu0 0.0
        %1896 = vmatpush1.msra.mxu0 0.0
        %1897 = vmatprep.subr.mxu0 0.0
        %1898 = vmatpush1.msra.mxu0 0.0
        %1899 = vmatprep.subr.mxu0 0.0
        %1900 = vmatpush1.msra.mxu0 0.0
        %1901 = vmatprep.subr.mxu0 0.0
        %1902 = vmatpush1.msra.mxu0 0.0
        %1903 = vmatprep.subr.mxu0 0.0
        %1904 = vmatpush1.msra.mxu0 0.0
        %1905 = vmatprep.subr.mxu0 0.0
        %1906 = vmatpush1.msra.mxu0 0.0
        %1907 = vmatprep.subr.mxu0 0.0
        %1908 = vmatpush1.msra.mxu0 0.0
        %1909 = vmatprep.subr.mxu0 0.0
        %1910 = vmatpush1.msra.mxu0 0.0
        %1911 = vmatprep.subr.mxu0 0.0
        %1912 = vmatpush1.msra.mxu0 0.0
        %1913 = vmatprep.subr.mxu0 0.0
        %1914 = vmatpush1.msra.mxu0 0.0
        %1915 = vmatprep.subr.mxu0 0.0
        %1916 = vmatpush1.msra.mxu0 0.0
        %1917 = vmatprep.subr.mxu0 0.0
        %1918 = vmatpush1.msra.mxu0 0.0
        %1919 = vmatprep.subr.mxu0 0.0
        %1920 = vmatpush1.msra.mxu0 0.0
        %1921 = vmatprep.subr.mxu0 0.0
        %1922 = vmatpush1.msra.mxu0 0.0
        %1923 = vmatprep.subr.mxu0 0.0
        %1924 = vmatpush1.msra.mxu0 0.0
        %1925 = vmatprep.subr.mxu0 0.0
        %1926 = vmatpush1.msra.mxu0 0.0
        %1927 = vmatprep.subr.mxu0 0.0
        %1928 = vmatpush1.msra.mxu0 0.0
        %1929 = vmatprep.subr.mxu0 0.0
        %1930 = vmatpush1.msra.mxu0 0.0
        %1931 = vmatprep.subr.mxu0 0.0
        %1932 = vmatpush1.msra.mxu0 0.0
        %1933 = vmatprep.subr.mxu0 0.0
        %1934 = vmatpush1.msra.mxu0 0.0
        %1935 = vmatprep.subr.mxu0 0.0
        %1936 = vmatpush1.msra.mxu0 0.0
        %1937 = vmatprep.subr.mxu0 0.0
        %1938 = vmatpush1.msra.mxu0 0.0
        %1939 = vmatprep.subr.mxu0 0.0
        %1940 = vmatpush1.msra.mxu0 0.0
        %1941 = vmatprep.subr.mxu0 0.0
        %1942 = vmatpush1.msra.mxu0 0.0
        %1943 = vmatprep.subr.mxu0 0.0
        %1944 = vmatpush1.msra.mxu0 0.0
        %1945 = vmatprep.subr.mxu0 0.0
        %1946 = vmatpush1.msra.mxu0 0.0
        %1947 = vmatprep.subr.mxu0 0.0
        %1948 = vmatpush1.msra.mxu0 0.0
        %1949 = vmatprep.subr.mxu0 0.0
        %1950 = vmatpush1.msra.mxu0 0.0
        %1951 = vmatprep.subr.mxu0 0.0
        %1952 = vmatpush1.msra.mxu0 0.0
        %1953 = vmatprep.subr.mxu0 0.0
        %1954 = vmatpush1.msra.mxu0 0.0
        %1955 = vmatprep.mubr.f32.mxu0 0.0
        %1956 = vmatmul.mubr.f32.gmra.mrb[0].mxu0 %v1889
        %v1957 = vpop.f32.mrb[0].mxu0
        %v1958 = vadd.f32 0.0, %v1957
        %v1959 = vpop.f32.mrb[0].mxu0
        %1960 = vdwg.mxu0
        %v1962 = vsel %vm359, %v1958, 0
        %1964 = vmatprep.subr.mxu0 0.0
        %1965 = vmatpush1.msra.mxu0 %v281
        %1966 = vmatprep.subr.mxu0 0.0
        %1967 = vmatpush1.msra.mxu0 %v282
        %1968 = vmatprep.subr.mxu0 0.0
        %1969 = vmatpush1.msra.mxu0 0.0
        %1970 = vmatprep.subr.mxu0 0.0
        %1971 = vmatpush1.msra.mxu0 0.0
        %1972 = vmatprep.subr.mxu0 0.0
        %1973 = vmatpush1.msra.mxu0 0.0
        %1974 = vmatprep.subr.mxu0 0.0
        %1975 = vmatpush1.msra.mxu0 0.0
        %1976 = vmatprep.subr.mxu0 0.0
        %1977 = vmatpush1.msra.mxu0 0.0
        %1978 = vmatprep.subr.mxu0 0.0
        %1979 = vmatpush1.msra.mxu0 0.0
        %1980 = vmatprep.subr.mxu0 0.0
        %1981 = vmatpush1.msra.mxu0 0.0
        %1982 = vmatprep.subr.mxu0 0.0
        %1983 = vmatpush1.msra.mxu0 0.0
        %1984 = vmatprep.subr.mxu0 0.0
        %1985 = vmatpush1.msra.mxu0 0.0
        %1986 = vmatprep.subr.mxu0 0.0
        %1987 = vmatpush1.msra.mxu0 0.0
        %1988 = vmatprep.subr.mxu0 0.0
        %1989 = vmatpush1.msra.mxu0 0.0
        %1990 = vmatprep.subr.mxu0 0.0
        %1991 = vmatpush1.msra.mxu0 0.0
        %1992 = vmatprep.subr.mxu0 0.0
        %1993 = vmatpush1.msra.mxu0 0.0
        %1994 = vmatprep.subr.mxu0 0.0
        %1995 = vmatpush1.msra.mxu0 0.0
        %1996 = vmatprep.subr.mxu0 0.0
        %1997 = vmatpush1.msra.mxu0 0.0
        %1998 = vmatprep.subr.mxu0 0.0
        %1999 = vmatpush1.msra.mxu0 0.0
        %2000 = vmatprep.subr.mxu0 0.0
        %2001 = vmatpush1.msra.mxu0 0.0
        %2002 = vmatprep.subr.mxu0 0.0
        %2003 = vmatpush1.msra.mxu0 0.0
        %2004 = vmatprep.subr.mxu0 0.0
        %2005 = vmatpush1.msra.mxu0 0.0
        %2006 = vmatprep.subr.mxu0 0.0
        %2007 = vmatpush1.msra.mxu0 0.0
        %2008 = vmatprep.subr.mxu0 0.0
        %2009 = vmatpush1.msra.mxu0 0.0
        %2010 = vmatprep.subr.mxu0 0.0
        %2011 = vmatpush1.msra.mxu0 0.0
        %2012 = vmatprep.subr.mxu0 0.0
        %2013 = vmatpush1.msra.mxu0 0.0
        %2014 = vmatprep.subr.mxu0 0.0
        %2015 = vmatpush1.msra.mxu0 0.0
        %2016 = vmatprep.subr.mxu0 0.0
        %2017 = vmatpush1.msra.mxu0 0.0
        %2018 = vmatprep.subr.mxu0 0.0
        %2019 = vmatpush1.msra.mxu0 0.0
        %2020 = vmatprep.subr.mxu0 0.0
        %2021 = vmatpush1.msra.mxu0 0.0
        %2022 = vmatprep.subr.mxu0 0.0
        %2023 = vmatpush1.msra.mxu0 0.0
        %2024 = vmatprep.subr.mxu0 0.0
        %2025 = vmatpush1.msra.mxu0 0.0
        %2026 = vmatprep.subr.mxu0 0.0
        %2027 = vmatpush1.msra.mxu0 0.0
        %2028 = vmatprep.mubr.f32.mxu0 0.0
        %2029 = vmatmul.mubr.f32.gmra.mrb[0].mxu0 %v1962
        %v2030 = vpop.f32.mrb[0].mxu0
        %v2031 = vadd.f32 0.0, %v2030
        %v2032 = vpop.f32.mrb[0].mxu0
        %2033 = vdwg.mxu0
        %v2034 = vadd.f32 %v1794, %v2031
        %2035 = vrot.lane.b32.xlu0 %v358, 16
        %v2036 = vpop.permute.xlu0 %2035
        %2037 = vrot.lane.b32.xlu0 %v354, 16
        %v2038 = vpop.permute.xlu0 %2037
        %v2039 = vsel %vm359, %v2036, 0
        %v2041 = vsel %vm359, %v2038, 0
        %2043 = vmatprep.subr.mxu0 0.0
        %2044 = vmatpush1.xpose.msra.mxu0 %v2041
        %2045 = vmatprep.subr.mxu0 0.0
        %2046 = vmatpush1.xpose.msra.mxu0 0.0
        %2047 = vmatprep.subr.mxu0 0.0
        %2048 = vmatpush1.xpose.msra.mxu0 0.0
        %2049 = vmatprep.subr.mxu0 0.0
        %2050 = vmatpush1.xpose.msra.mxu0 0.0
        %2051 = vmatprep.subr.mxu0 0.0
        %2052 = vmatpush1.xpose.msra.mxu0 0.0
        %2053 = vmatprep.subr.mxu0 0.0
        %2054 = vmatpush1.xpose.msra.mxu0 0.0
        %2055 = vmatprep.subr.mxu0 0.0
        %2056 = vmatpush1.xpose.msra.mxu0 0.0
        %2057 = vmatprep.subr.mxu0 0.0
        %2058 = vmatpush1.xpose.msra.mxu0 0.0
        %2059 = vmatprep.subr.mxu0 0.0
        %2060 = vmatpush1.xpose.msra.mxu0 0.0
        %2061 = vmatprep.subr.mxu0 0.0
        %2062 = vmatpush1.xpose.msra.mxu0 0.0
        %2063 = vmatprep.subr.mxu0 0.0
        %2064 = vmatpush1.xpose.msra.mxu0 0.0
        %2065 = vmatprep.subr.mxu0 0.0
        %2066 = vmatpush1.xpose.msra.mxu0 0.0
        %2067 = vmatprep.subr.mxu0 0.0
        %2068 = vmatpush1.xpose.msra.mxu0 0.0
        %2069 = vmatprep.subr.mxu0 0.0
        %2070 = vmatpush1.xpose.msra.mxu0 0.0
        %2071 = vmatprep.subr.mxu0 0.0
        %2072 = vmatpush1.xpose.msra.mxu0 0.0
        %2073 = vmatprep.subr.mxu0 0.0
        %2074 = vmatpush1.xpose.msra.mxu0 0.0
        %2075 = vmatprep.subr.mxu0 0.0
        %2076 = vmatpush1.xpose.msra.mxu0 0.0
        %2077 = vmatprep.subr.mxu0 0.0
        %2078 = vmatpush1.xpose.msra.mxu0 0.0
        %2079 = vmatprep.subr.mxu0 0.0
        %2080 = vmatpush1.xpose.msra.mxu0 0.0
        %2081 = vmatprep.subr.mxu0 0.0
        %2082 = vmatpush1.xpose.msra.mxu0 0.0
        %2083 = vmatprep.subr.mxu0 0.0
        %2084 = vmatpush1.xpose.msra.mxu0 0.0
        %2085 = vmatprep.subr.mxu0 0.0
        %2086 = vmatpush1.xpose.msra.mxu0 0.0
        %2087 = vmatprep.subr.mxu0 0.0
        %2088 = vmatpush1.xpose.msra.mxu0 0.0
        %2089 = vmatprep.subr.mxu0 0.0
        %2090 = vmatpush1.xpose.msra.mxu0 0.0
        %2091 = vmatprep.subr.mxu0 0.0
        %2092 = vmatpush1.xpose.msra.mxu0 0.0
        %2093 = vmatprep.subr.mxu0 0.0
        %2094 = vmatpush1.xpose.msra.mxu0 0.0
        %2095 = vmatprep.subr.mxu0 0.0
        %2096 = vmatpush1.xpose.msra.mxu0 0.0
        %2097 = vmatprep.subr.mxu0 0.0
        %2098 = vmatpush1.xpose.msra.mxu0 0.0
        %2099 = vmatprep.subr.mxu0 0.0
        %2100 = vmatpush1.xpose.msra.mxu0 0.0
        %2101 = vmatprep.subr.mxu0 0.0
        %2102 = vmatpush1.xpose.msra.mxu0 0.0
        %2103 = vmatprep.subr.mxu0 0.0
        %2104 = vmatpush1.xpose.msra.mxu0 0.0
        %2105 = vmatprep.subr.mxu0 0.0
        %2106 = vmatpush1.xpose.msra.mxu0 0.0
        %2107 = vmatprep.mubr.f32.mxu0 0.0
        %2108 = vmatmul.mubr.f32.gmra.mrb[0].mxu0 %v2039
        %v2109 = vpop.f32.mrb[0].mxu0
        %v2110 = vadd.f32 0.0, %v2109
        %v2111 = vpop.f32.mrb[0].mxu0
        %2112 = vdwg.mxu0
        %v2113 = vmul.f32 %v2110, 0.088388346
        %v2114 = vsel %vm437, %v2113, -inf
        %2115 = vmax.xlane.f32.xlu0 %v2114
        %v2116 = vpop.xlane.xlu0 %2115
        %v2117 = vsub.f32 %v2113, %v2116
        %v2118 = vmul.f32 %v2117, 1.442695
        %v2119 = vpow.pop %v2118
        %v2120 = vsel %vm437, %v2119, 0.0
        %2121 = vadd.xlane.f32.xlu0 %v2120
        %v2122 = vpop.xlane.xlu0 %2121
        %v2123 = vrcp.pop %v2122
        %v2124 = vmul.f32 %v2119, %v2123
        %2125 = vrot.lane.b32.xlu0 %v356, 16
        %v2126 = vpop.permute.xlu0 %2125
        %v2129 = vsel %vm437, %v2124, 0
        %2131 = vmatprep.subr.mxu0 0.0
        %2132 = vmatpush1.msra.mxu0 %v2126
        %2133 = vmatprep.subr.mxu0 0.0
        %2134 = vmatpush1.msra.mxu0 0.0
        %2135 = vmatprep.subr.mxu0 0.0
        %2136 = vmatpush1.msra.mxu0 0.0
        %2137 = vmatprep.subr.mxu0 0.0
        %2138 = vmatpush1.msra.mxu0 0.0
        %2139 = vmatprep.subr.mxu0 0.0
        %2140 = vmatpush1.msra.mxu0 0.0
        %2141 = vmatprep.subr.mxu0 0.0
        %2142 = vmatpush1.msra.mxu0 0.0
        %2143 = vmatprep.subr.mxu0 0.0
        %2144 = vmatpush1.msra.mxu0 0.0
        %2145 = vmatprep.subr.mxu0 0.0
        %2146 = vmatpush1.msra.mxu0 0.0
        %2147 = vmatprep.subr.mxu0 0.0
        %2148 = vmatpush1.msra.mxu0 0.0
        %2149 = vmatprep.subr.mxu0 0.0
        %2150 = vmatpush1.msra.mxu0 0.0
        %2151 = vmatprep.subr.mxu0 0.0
        %2152 = vmatpush1.msra.mxu0 0.0
        %2153 = vmatprep.subr.mxu0 0.0
        %2154 = vmatpush1.msra.mxu0 0.0
        %2155 = vmatprep.subr.mxu0 0.0
        %2156 = vmatpush1.msra.mxu0 0.0
        %2157 = vmatprep.subr.mxu0 0.0
        %2158 = vmatpush1.msra.mxu0 0.0
        %2159 = vmatprep.subr.mxu0 0.0
        %2160 = vmatpush1.msra.mxu0 0.0
        %2161 = vmatprep.subr.mxu0 0.0
        %2162 = vmatpush1.msra.mxu0 0.0
        %2163 = vmatprep.subr.mxu0 0.0
        %2164 = vmatpush1.msra.mxu0 0.0
        %2165 = vmatprep.subr.mxu0 0.0
        %2166 = vmatpush1.msra.mxu0 0.0
        %2167 = vmatprep.subr.mxu0 0.0
        %2168 = vmatpush1.msra.mxu0 0.0
        %2169 = vmatprep.subr.mxu0 0.0
        %2170 = vmatpush1.msra.mxu0 0.0
        %2171 = vmatprep.subr.mxu0 0.0
        %2172 = vmatpush1.msra.mxu0 0.0
        %2173 = vmatprep.subr.mxu0 0.0
        %2174 = vmatpush1.msra.mxu0 0.0
        %2175 = vmatprep.subr.mxu0 0.0
        %2176 = vmatpush1.msra.mxu0 0.0
        %2177 = vmatprep.subr.mxu0 0.0
        %2178 = vmatpush1.msra.mxu0 0.0
        %2179 = vmatprep.subr.mxu0 0.0
        %2180 = vmatpush1.msra.mxu0 0.0
        %2181 = vmatprep.subr.mxu0 0.0
        %2182 = vmatpush1.msra.mxu0 0.0
        %2183 = vmatprep.subr.mxu0 0.0
        %2184 = vmatpush1.msra.mxu0 0.0
        %2185 = vmatprep.subr.mxu0 0.0
        %2186 = vmatpush1.msra.mxu0 0.0
        %2187 = vmatprep.subr.mxu0 0.0
        %2188 = vmatpush1.msra.mxu0 0.0
        %2189 = vmatprep.subr.mxu0 0.0
        %2190 = vmatpush1.msra.mxu0 0.0
        %2191 = vmatprep.subr.mxu0 0.0
        %2192 = vmatpush1.msra.mxu0 0.0
        %2193 = vmatprep.subr.mxu0 0.0
        %2194 = vmatpush1.msra.mxu0 0.0
        %2195 = vmatprep.mubr.f32.mxu0 0.0
        %2196 = vmatmul.mubr.f32.gmra.mrb[0].mxu0 %v2129
        %v2197 = vpop.f32.mrb[0].mxu0
        %v2198 = vadd.f32 0.0, %v2197
        %v2199 = vpop.f32.mrb[0].mxu0
        %2200 = vdwg.mxu0
        %v2202 = vsel %vm359, %v2198, 0
        %2204 = vmatprep.subr.mxu0 0.0
        %2205 = vmatpush1.msra.mxu0 %v283
        %2206 = vmatprep.subr.mxu0 0.0
        %2207 = vmatpush1.msra.mxu0 %v284
        %2208 = vmatprep.subr.mxu0 0.0
        %2209 = vmatpush1.msra.mxu0 0.0
        %2210 = vmatprep.subr.mxu0 0.0
        %2211 = vmatpush1.msra.mxu0 0.0
        %2212 = vmatprep.subr.mxu0 0.0
        %2213 = vmatpush1.msra.mxu0 0.0
        %2214 = vmatprep.subr.mxu0 0.0
        %2215 = vmatpush1.msra.mxu0 0.0
        %2216 = vmatprep.subr.mxu0 0.0
        %2217 = vmatpush1.msra.mxu0 0.0
        %2218 = vmatprep.subr.mxu0 0.0
        %2219 = vmatpush1.msra.mxu0 0.0
        %2220 = vmatprep.subr.mxu0 0.0
        %2221 = vmatpush1.msra.mxu0 0.0
        %2222 = vmatprep.subr.mxu0 0.0
        %2223 = vmatpush1.msra.mxu0 0.0
        %2224 = vmatprep.subr.mxu0 0.0
        %2225 = vmatpush1.msra.mxu0 0.0
        %2226 = vmatprep.subr.mxu0 0.0
        %2227 = vmatpush1.msra.mxu0 0.0
        %2228 = vmatprep.subr.mxu0 0.0
        %2229 = vmatpush1.msra.mxu0 0.0
        %2230 = vmatprep.subr.mxu0 0.0
        %2231 = vmatpush1.msra.mxu0 0.0
        %2232 = vmatprep.subr.mxu0 0.0
        %2233 = vmatpush1.msra.mxu0 0.0
        %2234 = vmatprep.subr.mxu0 0.0
        %2235 = vmatpush1.msra.mxu0 0.0
        %2236 = vmatprep.subr.mxu0 0.0
        %2237 = vmatpush1.msra.mxu0 0.0
        %2238 = vmatprep.subr.mxu0 0.0
        %2239 = vmatpush1.msra.mxu0 0.0
        %2240 = vmatprep.subr.mxu0 0.0
        %2241 = vmatpush1.msra.mxu0 0.0
        %2242 = vmatprep.subr.mxu0 0.0
        %2243 = vmatpush1.msra.mxu0 0.0
        %2244 = vmatprep.subr.mxu0 0.0
        %2245 = vmatpush1.msra.mxu0 0.0
        %2246 = vmatprep.subr.mxu0 0.0
        %2247 = vmatpush1.msra.mxu0 0.0
        %2248 = vmatprep.subr.mxu0 0.0
        %2249 = vmatpush1.msra.mxu0 0.0
        %2250 = vmatprep.subr.mxu0 0.0
        %2251 = vmatpush1.msra.mxu0 0.0
        %2252 = vmatprep.subr.mxu0 0.0
        %2253 = vmatpush1.msra.mxu0 0.0
        %2254 = vmatprep.subr.mxu0 0.0
        %2255 = vmatpush1.msra.mxu0 0.0
        %2256 = vmatprep.subr.mxu0 0.0
        %2257 = vmatpush1.msra.mxu0 0.0
        %2258 = vmatprep.subr.mxu0 0.0
        %2259 = vmatpush1.msra.mxu0 0.0
        %2260 = vmatprep.subr.mxu0 0.0
        %2261 = vmatpush1.msra.mxu0 0.0
        %2262 = vmatprep.subr.mxu0 0.0
        %2263 = vmatpush1.msra.mxu0 0.0
        %2264 = vmatprep.subr.mxu0 0.0
        %2265 = vmatpush1.msra.mxu0 0.0
        %2266 = vmatprep.subr.mxu0 0.0
        %2267 = vmatpush1.msra.mxu0 0.0
        %2268 = vmatprep.mubr.f32.mxu0 0.0
        %2269 = vmatmul.mubr.f32.gmra.mrb[0].mxu0 %v2202
        %v2270 = vpop.f32.mrb[0].mxu0
        %v2271 = vadd.f32 0.0, %v2270
        %v2272 = vpop.f32.mrb[0].mxu0
        %2273 = vdwg.mxu0
        %v2274 = vadd.f32 %v2034, %v2271
        %v2276 = vlaneseq
        %v2277 = vshrl.u32 %v2276, 7
        %v2278 = vsub.s32 0, %v2277
        %v2279 = vrot.slane %v285, %v2278
        %v2281 = vadd.f32 %v2274, %v2279
        %2282 = vst [vmem:[%s228] sm:$0xff] %v2281
        %s2283 = sand.u32 %s142, 1
        %s2284 = scalar_lea.sflag [#allocation3], %s2283
        %s2285 = sand.u32 %s142, 1
        %s2286 = smul.addr %s2285, 8
        %s2287 = scalar_lea.vmem [#allocation2], %s2286
        // Predicated region
        $region41: #{attention_forward.1} parent=39 // pred_check
          %p2288 = pneg %p152
        $region42: #{attention_forward.1} parent=39 // pred_check_branch
          %2290 = sbr.rel (%p2288) target = $region44
        $region43: #{attention_forward.1} parent=39 // pred_region
          %s2292 = ssub.s32 128, 128
          %2293 = vsyncadd %s2284, %s2292
          %s2294 = smul.addr %s19, 128
          %s2295 = scalar_lea.hbm %s5, %s2294
          %s2297 = sshll.u32 %s2287, 4
          %s2298 = int_to_ptr.vmem [resolvable:$true] %s2297
          %2300 = dma.vmem_to_hbm [thread:$0]  %s2298, 128, %s2295, %s2284
        $region44: #{attention_forward.1} parent=39 // pred_fallthru
          _
      $region40: #{attention_forward.1} parent=5 // pred_fallthru
        _
      %p2301 = scmp.le.s32.totalorder 2, %s14
      // Predicated region
      $region45: #{attention_forward.1} parent=5 // pred_check
        %p2302 = pneg %p2301
      $region46: #{attention_forward.1} parent=5 // pred_check_branch
        %2304 = sbr.rel (%p2302) target = $region48
      $region47: #{attention_forward.1} parent=5 // pred_region
        %s2305 = ssub.s32 %s14, 2
        // Predicated region
        $region49: #{attention_forward.1} parent=47 // pred_check
          %p2306 = pneg %p158
        $region50: #{attention_forward.1} parent=47 // pred_check_branch
          %2308 = sbr.rel (%p2306) target = $region52
        $region51: #{attention_forward.1} parent=47 // pred_region
          %s2309 = sand.u32 %s143, 1
          %s2310 = scalar_lea.sflag [#allocation3], %s2309
          %s2311 = sand.u32 %s143, 1
          %s2312 = smul.addr %s2311, 8
          %s2313 = scalar_lea.vmem [#allocation2], %s2312
          %2314 = dma.done %s2310, 128
        $region52: #{attention_forward.1} parent=47 // pred_fallthru
          _
      $region48: #{attention_forward.1} parent=5 // pred_fallthru
        _
    $region6: #{attention_forward.1} parent=1 // loop_footer
      %s18 = sadd.s32 1, %s14
    $region7: #{attention_forward.1} parent=1 // loop_footer_branch
      %13 = sbr.rel target = $region3
    $region8: #{attention_forward.1} parent=1 // loop_exit
      _
    %2315 = vsyncpa [#allocation3], 1
    %s2316 = scalar_lea.sflag [#allocation3], 1
    %2317 = vsyncpa %s2316, 1

</llo_original>
